<compile_context>
chip_gen: v7x
topology: tpu7x:2x2x1
jax: 0.10.0
libtpu: 0.0.40
codegen_flags: <defaults>
</compile_context>

<pallas_src>
import math

import numpy as np
import jax
import jax.numpy as jnp
from jax.experimental import pallas as pl
from jax.experimental.pallas import tpu as pltpu


APPROX_RECIPROCAL = True  # EUP vrcp for the softmax denominator; set False for exact divide.


# --------------------------------------------------------------------------- kernel
def ble_kernel(x_ref, bias_ref, wqkv_hbm, bqkv_ref, wof1_hbm, bof1_ref, w2_hbm, b2_ref,
               out_ref, wqkv_v, wof1_v, w2_v):
    # One-time load of the grid-invariant bf16 weights into single-buffered VMEM scratch.
    @pl.when(pl.program_id(0) == 0)
    def _load_weights():
        pltpu.sync_copy(wqkv_hbm, wqkv_v)
        pltpu.sync_copy(wof1_hbm, wof1_v)
        pltpu.sync_copy(w2_hbm, w2_v)

    xb = x_ref[...]                                           # (TB, S, E) bf16
    TB, S, E = xb.shape
    M = TB * S
    x2d = xb.reshape(M, E)

    # Fused q/k/v projection: bf16 x bf16 operands, f32 accumulation on the MXU.
    qkv = jnp.dot(x2d, wqkv_v[...], preferred_element_type=jnp.float32)
    qkv = qkv + bqkv_ref[...]                                 # (M, 3E) f32
    q = qkv[:, :E].astype(jnp.bfloat16)
    k = qkv[:, E:2 * E].astype(jnp.bfloat16)
    v = qkv[:, 2 * E:].astype(jnp.bfloat16)

    # One lane-dense (M, M) score matmul; block-diagonal + key-padding additive bias.
    scores = jnp.einsum('me,ne->mn', q, k, preferred_element_type=jnp.float32)
    scores = scores * (1.0 / math.sqrt(E)) + bias_ref[...]    # (M, M) f32

    # Softmax over the full (lane-dense) key axis; f32 elementwise throughout.
    m_max = jnp.max(scores, axis=-1, keepdims=True)
    p = jnp.exp(scores - m_max)
    denom = jnp.sum(p, axis=-1, keepdims=True)
    if APPROX_RECIPROCAL:
        attn = p * pl.reciprocal(denom, approx=True)
    else:
        attn = p / denom

    # Context, then mean over the sequence BEFORE the (folded) projection (mean is linear).
    ctx = jnp.dot(attn.astype(jnp.bfloat16), v, preferred_element_type=jnp.float32)  # (M, E)
    pooled = jnp.mean(ctx.reshape(TB, S, E), axis=1)          # (TB, E) f32

    # fc1 with out_proj folded in, ReLU, then fc2.
    h = jnp.maximum(
        jnp.dot(pooled.astype(jnp.bfloat16), wof1_v[...],
                preferred_element_type=jnp.float32) + bof1_ref[...],
        0.0)
    y = jnp.dot(h.astype(jnp.bfloat16), w2_v[...],
                preferred_element_type=jnp.float32) + b2_ref[...]

    out_ref[...] = y.astype(out_ref.dtype)                    # (TB, O)


# --------------------------------------------------------------------------- wrapper
def _pick_tb(B, S, target_m=256):
    """Largest divisor of B with TB*S near target_m, TB a multiple of 8 (or TB == B)."""
    tb = max(1, min(B, max(1, target_m // max(S, 1))))
    while tb > 1 and (B % tb != 0 or (tb % 8 != 0 and tb != B)):
        tb -= 1
    if B % tb != 0:
        tb = 1
    return tb


def _vmem_capacity_bytes():
    # Capability probe only (never masks kernel errors); conservative v7x per-core default.
    try:
        return int(pltpu.get_tpu_info().vmem_capacity_bytes)
    except Exception:
        return 64 << 20


def _vmem_limit_bytes(S, E, H, O, TB):
    M = TB * S
    weights = (E * 3 * E + E * H + H * O) * 2                      # single-buffered bf16 scratch
    blocks = TB * S * E * 2 + M * M * 4 + TB * O * 4 + (3 * E + H + O) * 4
    acts = 2 * M * 3 * E * 4 + 3 * M * M * 4 + 2 * M * E * 4       # in-kernel temporaries headroom
    needed = weights + 2 * blocks + acts + (4 << 20)
    cap = _vmem_capacity_bytes()
    return int(min(max(needed, 32 << 20), int(0.75 * cap)))


def _make_call(B, S, E, H, O, TB, vmem_limit_bytes):
    M = TB * S
    G = B // TB
    inv2 = lambda b: (0, 0)
    grid_spec = pltpu.PrefetchScalarGridSpec(
        num_scalar_prefetch=0,
        grid=(G,),
        in_specs=[
            pl.BlockSpec((TB, S, E), lambda b: (b, 0, 0)),      # x block (bf16)
            pl.BlockSpec((None, M, M), lambda b: (b, 0, 0)),    # additive mask bias (f32)
            pl.BlockSpec(memory_space=pl.ANY),                  # Wqkv    (E, 3E) bf16, HBM
            pl.BlockSpec((1, 3 * E), inv2),                     # bqkv    (1, 3E) f32
            pl.BlockSpec(memory_space=pl.ANY),                  # Wo@W1   (E, H)  bf16, HBM
            pl.BlockSpec((1, H), inv2),                         # bo@W1+b1 (1, H) f32
            pl.BlockSpec(memory_space=pl.ANY),                  # W2      (H, O)  bf16, HBM
            pl.BlockSpec((1, O), inv2),                         # b2      (1, O)  f32
        ],
        out_specs=pl.BlockSpec((TB, O), lambda b: (b, 0)),      # lane-dense 2-D output slab
        scratch_shapes=[
            pltpu.VMEM((E, 3 * E), jnp.bfloat16),               # single-buffered weights
            pltpu.VMEM((E, H), jnp.bfloat16),
            pltpu.VMEM((H, O), jnp.bfloat16),
        ],
    )
    return pl.pallas_call(
        ble_kernel,
        out_shape=jax.ShapeDtypeStruct((B, O), jnp.float32),
        grid_spec=grid_spec,
        compiler_params=pltpu.CompilerParams(
            # "arbitrary": the batch axis runs in order on one core so the one-time weight
            # load at program_id(0)==0 is visible to every later step (and weight HBM reads
            # are not duplicated per core on v7x in the weight-DMA-bound regime).
            dimension_semantics=("arbitrary",),
            vmem_limit_bytes=vmem_limit_bytes),
    )


def ble_pred_forward(x, params):
    """x: (B, S, E).  params = (Wqkv, bqkv, W_of1, b_of1, W2, b2) with weight matrices
    pre-transposed to (in, out) layout and stored bf16; biases f32 of shape (1, .)."""
    wqkv, bqkv, wof1, bof1, w2, b2 = params
    B, S, E = x.shape
    H = wof1.shape[1]
    O = w2.shape[1]
    TB = _pick_tb(B, S)
    G = B // TB
    M = TB * S

    # key_padding_mask (module's generate_attention_mask) from the ORIGINAL x, combined with
    # the block-diagonal sequence mask, shipped as one additive f32 bias per grid block.
    nonpad = jnp.any(x != 0.0, axis=-1)                            # (B, S), True = real token
    seq_id = np.repeat(np.arange(TB), S)                           # (M,) host constant
    same_seq = jnp.asarray(seq_id[:, None] == seq_id[None, :])     # (M, M) block-diagonal
    keep = jnp.logical_and(same_seq[None, :, :], nonpad.reshape(G, 1, M))
    bias = jnp.where(keep, 0.0, -1e30).astype(jnp.float32)         # (G, M, M)

    call = _make_call(B, S, E, H, O, TB, _vmem_limit_bytes(S, E, H, O, TB))
    return call(x.astype(jnp.bfloat16), bias, wqkv, bqkv, wof1, bof1, w2, b2)


# --------------------------------------------------------------------------- reference
def ref_forward(x, params):
    """Pure-JAX reference for the module forward, using the same fused bf16 weights and
    mirroring the kernel's bf16 matmul operands (f32 accumulation) so the check isolates
    kernel correctness from the intentional quantization."""
    wqkv, bqkv, wof1, bof1, w2, b2 = params
    E = x.shape[-1]
    f32 = jnp.float32
    bf = lambda a: a.astype(jnp.bfloat16).astype(f32)
    Wqkv, Wof1, W2 = wqkv.astype(f32), wof1.astype(f32), w2.astype(f32)

    qkv = jnp.einsum('bse,ef->bsf', bf(x), Wqkv) + bqkv
    q, k, v = qkv[..., :E], qkv[..., E:2 * E], qkv[..., 2 * E:]
    scores = jnp.einsum('bqe,bke->bqk', bf(q), bf(k)) * (1.0 / math.sqrt(E))
    nonpad = jnp.any(x != 0.0, axis=-1)                            # (B, S)
    scores = scores + jnp.where(nonpad, 0.0, -1e30)[:, None, :]    # key_padding_mask
    attn = jax.nn.softmax(scores, axis=-1)
    ctx = jnp.einsum('bqk,bke->bqe', bf(attn), bf(v))
    pooled = jnp.mean(ctx, axis=1)                                 # mean over seq
    h = jax.nn.relu(bf(pooled) @ Wof1 + bof1)                      # out_proj folded into fc1
    return bf(h) @ W2 + b2


# --------------------------------------------------------------------------- main
if __name__ == "__main__":
    # Small shapes consistent with the module (module defaults are E=H=2048, O=16).
    B, S, E, H, O = 64, 8, 128, 256, 16

    key = jax.random.PRNGKey(0)
    ks = jax.random.split(key, 13)
    sc = 0.05
    wq = sc * jax.random.normal(ks[0], (E, E), jnp.float32)    # in_proj slices, (in, out) layout
    wk = sc * jax.random.normal(ks[1], (E, E), jnp.float32)
    wv = sc * jax.random.normal(ks[2], (E, E), jnp.float32)
    bq = sc * jax.random.normal(ks[3], (1, E), jnp.float32)
    bk = sc * jax.random.normal(ks[4], (1, E), jnp.float32)
    bv = sc * jax.random.normal(ks[5], (1, E), jnp.float32)
    wo = sc * jax.random.normal(ks[6], (E, E), jnp.float32)    # out_proj
    bo = sc * jax.random.normal(ks[7], (1, E), jnp.float32)
    w1 = sc * jax.random.normal(ks[8], (E, H), jnp.float32)    # fc1
    b1 = sc * jax.random.normal(ks[9], (1, H), jnp.float32)
    w2 = sc * jax.random.normal(ks[10], (H, O), jnp.float32)   # fc2
    b2 = sc * jax.random.normal(ks[11], (1, O), jnp.float32)

    # Host-side fusion / quantization:
    #   Wqkv = [Wq | Wk | Wv] (bf16),  W_of1 = Wo @ W1, b_of1 = bo @ W1 + b1 (out_proj -> fc1).
    wqkv_bf = jnp.concatenate([wq, wk, wv], axis=1).astype(jnp.bfloat16)   # (E, 3E)
    bqkv = jnp.concatenate([bq, bk, bv], axis=1)                           # (1, 3E)
    wof1_bf = (wo @ w1).astype(jnp.bfloat16)                               # (E, H)
    bof1 = bo @ w1 + b1                                                    # (1, H)
    w2_bf = w2.astype(jnp.bfloat16)                                        # (H, O)
    params = (wqkv_bf, bqkv, wof1_bf, bof1, w2_bf, b2)

    x = jax.random.normal(ks[12], (B, S, E), jnp.float32)
    # Zero trailing positions of a few sequences (in both grid blocks) so the
    # key_padding_mask path is exercised.  (Note: a fully-padded sequence gives uniform
    # attention here vs NaN in PyTorch; degenerate case, intentionally not exercised.)
    x = x.at[1, S - 2:, :].set(0.0)
    x = x.at[17, S - 3:, :].set(0.0)
    x = x.at[40, S - 1:, :].set(0.0)
    x = x.at[63, S - 4:, :].set(0.0)

    y = jax.block_until_ready(ble_pred_forward(x, params))
    y_ref = jax.block_until_ready(ref_forward(x, params))

    assert y.shape == (B, O), y.shape
    err = float(jnp.max(jnp.abs(y - y_ref)))
    assert err < 2e-3, f"max abs err = {err}"
    print("KERNEL_OK")
</pallas_src>

<mosaic_0001>
module attributes {stable_mosaic.version = 11 : i64} {
  func.func @ble_kernel(%arg0: i32, %arg1: memref<32x8x128xbf16, #tpu.memory_space<vmem>>, %arg2: memref<1x256x256xf32, #tpu.memory_space<vmem>>, %arg3: memref<128x384xbf16, #tpu.memory_space<any>>, %arg4: memref<1x384xf32, #tpu.memory_space<vmem>>, %arg5: memref<128x256xbf16, #tpu.memory_space<any>>, %arg6: memref<1x256xf32, #tpu.memory_space<vmem>>, %arg7: memref<256x16xbf16, #tpu.memory_space<any>>, %arg8: memref<1x16xf32, #tpu.memory_space<vmem>>, %arg9: memref<32x16xf32, #tpu.memory_space<vmem>>, %arg10: memref<128x384xbf16, #tpu.memory_space<vmem>>, %arg11: memref<128x256xbf16, #tpu.memory_space<vmem>>, %arg12: memref<256x16xbf16, #tpu.memory_space<vmem>>) attributes {dimension_semantics = [#tpu.dimension_semantics<arbitrary>], iteration_bounds = array<i64: 2>, scalar_prefetch = 0 : i64, scratch_operands = 3 : i64, tpu.core_type = #tpu.core_type<tc>, window_params = [{transform_indices = @transform_0, window_bounds = array<i64: 32, 8, 128>}, {transform_indices = @transform_1, window_bounds = array<i64: 1, 256, 256>}, {}, {pipeline_mode = #tpu.pipeline_mode<synchronous>, transform_indices = @transform_3, window_bounds = array<i64: 1, 384>}, {}, {pipeline_mode = #tpu.pipeline_mode<synchronous>, transform_indices = @transform_5, window_bounds = array<i64: 1, 256>}, {}, {pipeline_mode = #tpu.pipeline_mode<synchronous>, transform_indices = @transform_7, window_bounds = array<i64: 1, 16>}, {transform_indices = @transform_8, window_bounds = array<i64: 32, 16>}]} {
    %c0_i32 = arith.constant 0 : i32
    %0 = arith.cmpi eq, %arg0, %c0_i32 : i32
    %1 = arith.extui %0 : i1 to i32
    %c0_i32_0 = arith.constant 0 : i32
    %2 = arith.cmpi ne, %1, %c0_i32_0 : i32
    scf.if %2 {
      "tpu.region"() ({
        %53 = tpu.sem_alloc : memref<!tpu.dma_semaphore, #tpu.memory_space<semaphore_mem>>
        tpu.enqueue_dma source(%arg3 : memref<128x384xbf16, #tpu.memory_space<any>>) target(%arg10 : memref<128x384xbf16, #tpu.memory_space<vmem>>) target_semaphore(%53 : memref<!tpu.dma_semaphore, #tpu.memory_space<semaphore_mem>>)
        tpu.wait_dma2 semaphore(%53 : memref<!tpu.dma_semaphore, #tpu.memory_space<semaphore_mem>>) src(%arg3 : memref<128x384xbf16, #tpu.memory_space<any>>) dst(%arg10 : memref<128x384xbf16, #tpu.memory_space<vmem>>)
        tpu.yield
      }) : () -> ()
      "tpu.region"() ({
        %53 = tpu.sem_alloc : memref<!tpu.dma_semaphore, #tpu.memory_space<semaphore_mem>>
        tpu.enqueue_dma source(%arg5 : memref<128x256xbf16, #tpu.memory_space<any>>) target(%arg11 : memref<128x256xbf16, #tpu.memory_space<vmem>>) target_semaphore(%53 : memref<!tpu.dma_semaphore, #tpu.memory_space<semaphore_mem>>)
        tpu.wait_dma2 semaphore(%53 : memref<!tpu.dma_semaphore, #tpu.memory_space<semaphore_mem>>) src(%arg5 : memref<128x256xbf16, #tpu.memory_space<any>>) dst(%arg11 : memref<128x256xbf16, #tpu.memory_space<vmem>>)
        tpu.yield
      }) : () -> ()
      "tpu.region"() ({
        %53 = tpu.sem_alloc : memref<!tpu.dma_semaphore, #tpu.memory_space<semaphore_mem>>
        tpu.enqueue_dma source(%arg7 : memref<256x16xbf16, #tpu.memory_space<any>>) target(%arg12 : memref<256x16xbf16, #tpu.memory_space<vmem>>) target_semaphore(%53 : memref<!tpu.dma_semaphore, #tpu.memory_space<semaphore_mem>>)
        tpu.wait_dma2 semaphore(%53 : memref<!tpu.dma_semaphore, #tpu.memory_space<semaphore_mem>>) src(%arg7 : memref<256x16xbf16, #tpu.memory_space<any>>) dst(%arg12 : memref<256x16xbf16, #tpu.memory_space<vmem>>)
        tpu.yield
      }) : () -> ()
    } else {
    }
    %c0 = arith.constant 0 : index
    %c0_1 = arith.constant 0 : index
    %c0_2 = arith.constant 0 : index
    %3 = vector.load %arg1[%c0, %c0_1, %c0_2] : memref<32x8x128xbf16, #tpu.memory_space<vmem>>, vector<32x8x128xbf16>
    %4 = vector.shape_cast %3 : vector<32x8x128xbf16> to vector<256x128xbf16>
    %c0_3 = arith.constant 0 : index
    %c0_4 = arith.constant 0 : index
    %5 = vector.load %arg10[%c0_3, %c0_4] : memref<128x384xbf16, #tpu.memory_space<vmem>>, vector<128x384xbf16>
    %cst = arith.constant dense<0.000000e+00> : vector<256x384xf32>
    %6 = tpu.matmul %4, %5, %cst {dimension_numbers = #tpu.dot_dimension_numbers<[1], [0], [0], [1], [0, 0, 1, 1], [], []>} : vector<256x128xbf16>, vector<128x384xbf16>, vector<256x384xf32> -> vector<256x384xf32>
    %c0_5 = arith.constant 0 : index
    %c0_6 = arith.constant 0 : index
    %7 = vector.load %arg4[%c0_5, %c0_6] : memref<1x384xf32, #tpu.memory_space<vmem>>, vector<1x384xf32>
    %8 = vector.broadcast %7 : vector<1x384xf32> to vector<256x384xf32>
    %9 = arith.addf %6, %8 : vector<256x384xf32>
    %10 = vector.extract_strided_slice %9 {offsets = [0, 0], sizes = [256, 128], strides = [1, 1]} : vector<256x384xf32> to vector<256x128xf32>
    %11 = arith.truncf %10 : vector<256x128xf32> to vector<256x128xbf16>
    %12 = vector.extract_strided_slice %9 {offsets = [0, 128], sizes = [256, 128], strides = [1, 1]} : vector<256x384xf32> to vector<256x128xf32>
    %13 = arith.truncf %12 : vector<256x128xf32> to vector<256x128xbf16>
    %14 = vector.extract_strided_slice %9 {offsets = [0, 256], sizes = [256, 128], strides = [1, 1]} : vector<256x384xf32> to vector<256x128xf32>
    %15 = arith.truncf %14 : vector<256x128xf32> to vector<256x128xbf16>
    "tpu.trace_start"() <{level = 10 : i32, message = "me,ne->mn"}> : () -> ()
    %cst_7 = arith.constant dense<0.000000e+00> : vector<256x256xf32>
    %16 = tpu.matmul %11, %13, %cst_7 {dimension_numbers = #tpu.dot_dimension_numbers<[1], [1], [0], [0], [0, 0, 1, 0], [], []>} : vector<256x128xbf16>, vector<256x128xbf16>, vector<256x256xf32> -> vector<256x256xf32>
    "tpu.trace_stop"() : () -> ()
    %cst_8 = arith.constant 0.0883883461 : f32
    %17 = vector.broadcast %cst_8 : f32 to vector<256x256xf32>
    %18 = arith.mulf %16, %17 : vector<256x256xf32>
    %c0_9 = arith.constant 0 : index
    %c0_10 = arith.constant 0 : index
    %c0_11 = arith.constant 0 : index
    %19 = vector.load %arg2[%c0_9, %c0_10, %c0_11] : memref<1x256x256xf32, #tpu.memory_space<vmem>>, vector<1x256x256xf32>
    %20 = vector.shape_cast %19 : vector<1x256x256xf32> to vector<256x256xf32>
    %21 = arith.addf %18, %20 : vector<256x256xf32>
    %cst_12 = arith.constant dense<0xFF800000> : vector<256xf32>
    %22 = vector.multi_reduction <maximumf>, %21, %cst_12 [1] : vector<256x256xf32> to vector<256xf32>
    %23 = vector.shape_cast %22 : vector<256xf32> to vector<256x1xf32>
    %24 = vector.broadcast %23 : vector<256x1xf32> to vector<256x256xf32>
    %25 = arith.subf %21, %24 : vector<256x256xf32>
    %26 = math.exp %25 : vector<256x256xf32>
    %cst_13 = arith.constant dense<0.000000e+00> : vector<256xf32>
    %27 = vector.multi_reduction <add>, %26, %cst_13 [1] : vector<256x256xf32> to vector<256xf32>
    %28 = vector.shape_cast %27 : vector<256xf32> to vector<256x1xf32>
    %29 = tpu.reciprocal %28 {approx = true} : vector<256x1xf32> -> vector<256x1xf32>
    %30 = vector.broadcast %29 : vector<256x1xf32> to vector<256x256xf32>
    %31 = arith.mulf %26, %30 : vector<256x256xf32>
    %32 = arith.truncf %31 : vector<256x256xf32> to vector<256x256xbf16>
    %cst_14 = arith.constant dense<0.000000e+00> : vector<256x128xf32>
    %33 = tpu.matmul %32, %15, %cst_14 {dimension_numbers = #tpu.dot_dimension_numbers<[1], [0], [0], [1], [0, 0, 1, 1], [], []>} : vector<256x256xbf16>, vector<256x128xbf16>, vector<256x128xf32> -> vector<256x128xf32>
    %34 = vector.shape_cast %33 : vector<256x128xf32> to vector<32x8x128xf32>
    %cst_15 = arith.constant dense<0.000000e+00> : vector<32x128xf32>
    %35 = vector.multi_reduction <add>, %34, %cst_15 [1] : vector<32x8x128xf32> to vector<32x128xf32>
    %cst_16 = arith.constant 8.000000e+00 : f32
    %36 = vector.broadcast %cst_16 : f32 to vector<32x128xf32>
    %37 = arith.divf %35, %36 : vector<32x128xf32>
    %38 = arith.truncf %37 : vector<32x128xf32> to vector<32x128xbf16>
    %c0_17 = arith.constant 0 : index
    %c0_18 = arith.constant 0 : index
    %39 = vector.load %arg11[%c0_17, %c0_18] : memref<128x256xbf16, #tpu.memory_space<vmem>>, vector<128x256xbf16>
    %cst_19 = arith.constant dense<0.000000e+00> : vector<32x256xf32>
    %40 = tpu.matmul %38, %39, %cst_19 {dimension_numbers = #tpu.dot_dimension_numbers<[1], [0], [0], [1], [0, 0, 1, 1], [], []>} : vector<32x128xbf16>, vector<128x256xbf16>, vector<32x256xf32> -> vector<32x256xf32>
    %c0_20 = arith.constant 0 : index
    %c0_21 = arith.constant 0 : index
    %41 = vector.load %arg6[%c0_20, %c0_21] : memref<1x256xf32, #tpu.memory_space<vmem>>, vector<1x256xf32>
    %42 = vector.broadcast %41 : vector<1x256xf32> to vector<32x256xf32>
    %43 = arith.addf %40, %42 : vector<32x256xf32>
    %cst_22 = arith.constant 0.000000e+00 : f32
    %44 = vector.broadcast %cst_22 : f32 to vector<32x256xf32>
    %45 = arith.maximumf %43, %44 : vector<32x256xf32>
    %46 = arith.truncf %45 : vector<32x256xf32> to vector<32x256xbf16>
    %c0_23 = arith.constant 0 : index
    %c0_24 = arith.constant 0 : index
    %47 = vector.load %arg12[%c0_23, %c0_24] : memref<256x16xbf16, #tpu.memory_space<vmem>>, vector<256x16xbf16>
    %cst_25 = arith.constant dense<0.000000e+00> : vector<32x16xf32>
    %48 = tpu.matmul %46, %47, %cst_25 {dimension_numbers = #tpu.dot_dimension_numbers<[1], [0], [0], [1], [0, 0, 1, 1], [], []>} : vector<32x256xbf16>, vector<256x16xbf16>, vector<32x16xf32> -> vector<32x16xf32>
    %c0_26 = arith.constant 0 : index
    %c0_27 = arith.constant 0 : index
    %49 = vector.load %arg8[%c0_26, %c0_27] : memref<1x16xf32, #tpu.memory_space<vmem>>, vector<1x16xf32>
    %50 = vector.broadcast %49 : vector<1x16xf32> to vector<32x16xf32>
    %51 = arith.addf %48, %50 : vector<32x16xf32>
    %c0_28 = arith.constant 0 : index
    %c0_29 = arith.constant 0 : index
    %52 = vector.load %arg9[%c0_28, %c0_29] : memref<32x16xf32, #tpu.memory_space<vmem>>, vector<32x16xf32>
    tpu.vector_store %arg9[%c0_28, %c0_29], %51 {strides = array<i32>} : memref<32x16xf32, #tpu.memory_space<vmem>>, vector<32x16xf32>,
    return
  }
  func.func @transform_0(%arg0: i32) -> (i32, i32, i32) {
    %c0_i32 = arith.constant 0 : i32
    %c0_i32_0 = arith.constant 0 : i32
    %c0_i32_1 = arith.constant 0 : i32
    return %arg0, %c0_i32, %c0_i32_0 : i32, i32, i32
  }
  func.func @transform_1(%arg0: i32) -> (i32, i32, i32) {
    %c0_i32 = arith.constant 0 : i32
    %c0_i32_0 = arith.constant 0 : i32
    %c0_i32_1 = arith.constant 0 : i32
    return %arg0, %c0_i32, %c0_i32_0 : i32, i32, i32
  }
  func.func @transform_3(%arg0: i32) -> (i32, i32) {
    %c0_i32 = arith.constant 0 : i32
    %c0_i32_0 = arith.constant 0 : i32
    %c0_i32_1 = arith.constant 0 : i32
    return %c0_i32, %c0_i32_0 : i32, i32
  }
  func.func @transform_5(%arg0: i32) -> (i32, i32) {
    %c0_i32 = arith.constant 0 : i32
    %c0_i32_0 = arith.constant 0 : i32
    %c0_i32_1 = arith.constant 0 : i32
    return %c0_i32, %c0_i32_0 : i32, i32
  }
  func.func @transform_7(%arg0: i32) -> (i32, i32) {
    %c0_i32 = arith.constant 0 : i32
    %c0_i32_0 = arith.constant 0 : i32
    %c0_i32_1 = arith.constant 0 : i32
    return %c0_i32, %c0_i32_0 : i32, i32
  }
  func.func @transform_8(%arg0: i32) -> (i32, i32) {
    %c0_i32 = arith.constant 0 : i32
    %c0_i32_0 = arith.constant 0 : i32
    return %arg0, %c0_i32 : i32, i32
  }
}

</mosaic_0001>

<llo_original>
// kernel: tpu_custom_call.1
$region0: #{tpu_custom_call.1}
  #allocation0 [shape = 'u32[]', space=smem, size = 0x4, offset = 0x4, fixed_abs, tag = 'smem constant byte address 0x4 - core index']
  #allocation1 [shape = 'u32[144,128]{1,0:T(1,128)}', space=vmem, size = 0x12000, scoped, tag = 'internal scratch']
  #allocation2 [shape = 'bf16[128,384]{1,0:T(16,128)(2,1)}', space=vmem, size = 0x18000, scoped, tag = 'scratch operand']
  #allocation3 [shape = 'bf16[128,256]{1,0:T(16,128)(2,1)}', space=vmem, size = 0x10000, scoped, tag = 'scratch operand']
  #allocation4 [shape = 'bf16[256,16]{1,0:T(16,128)(2,1)}', space=vmem, size = 0x10000, scoped, tag = 'scratch operand']
  #allocation10 [shape = 's32[]', space=sflag, size = 0x4, offset = 0, fixed_abs, tag = 'sflag constant byte address 0x0 - dummy sync flag']
  #allocation13 [shape = 's32[]', space=sflag, size = 0x4, offset = 0, fixed_abs, tag = 'sflag constant byte address 0x0 - dummy sync flag']
  #allocation15 [shape = 's32[]', space=sflag, size = 0x4, offset = 0, fixed_abs, tag = 'sflag constant byte address 0x0 - dummy sync flag']
  %s0 = inlined_call_operand.hbm [shape: bf16[64,8,128], index: 0, kind: input, shape index: {}]
  %s1 = inlined_call_operand.hbm [shape: f32[2,256,256], index: 1, kind: input, shape index: {}]
  %s2 = inlined_call_operand.hbm [shape: bf16[128,384], index: 2, kind: input, shape index: {}]
  %s3 = inlined_call_operand.vmem [shape: f32[1,384], index: 3, kind: input, shape index: {}]
  %s4 = inlined_call_operand.vmem [shape: bf16[128,256], index: 4, kind: input, shape index: {}]
  %s5 = inlined_call_operand.vmem [shape: f32[1,256], index: 5, kind: input, shape index: {}]
  %s6 = inlined_call_operand.vmem [shape: bf16[256,16], index: 6, kind: input, shape index: {}]
  %s7 = inlined_call_operand.vmem [shape: f32[1,16], index: 7, kind: input, shape index: {}]
  %s8 = inlined_call_operand.vmem [shape: f32[64,16], index: 8, kind: output, shape index: {}]
  %s9 = sld [smem:[#allocation0]]
  $region139: #{tpu_custom_call.1} parent=0
    _
  %s11 = ssub.s32 1, %s9
  %s12 = scalar_select 0, %s11, %s9
  $region1: #{tpu_custom_call.1} parent=0
    #allocation5 [shape = 'u8[131072]{0}', space=vmem, size = 0x20000, scoped, tag = 'input window, operand 0']
    #allocation6 [shape = 's32[2]{0}', space=sflag, size = 0x8, scoped, tag = 'scoped memory for tpu_custom_call.1']
    #allocation7 [shape = 'u8[524288]{0}', space=vmem, size = 0x80000, scoped, tag = 'input window, operand 1']
    #allocation8 [shape = 's32[2]{0}', space=sflag, size = 0x8, scoped, tag = 'scoped memory for tpu_custom_call.1']
    %13 = vsyncpa [#allocation6], 0
    %s14 = scalar_lea.sflag [#allocation6], 1
    %15 = vsyncpa %s14, 0
    %16 = vsyncpa [#allocation8], 0
    %s17 = scalar_lea.sflag [#allocation8], 1
    %18 = vsyncpa %s17, 0
    loop: start=0, step=1, limit=4
    $region2: #{tpu_custom_call.1} parent=1 // loop_pre_header
      _
    $region3: #{tpu_custom_call.1} parent=1 // loop_header
      %s20 = sphi 0, %s24
      %p21 = scmp.ge.s32.totalorder %s20, 4
      %s30 = sphi 0, %s32
      %s33 = sphi 0, %s30
      %s34 = sphi 0, %s33
      %s50 = sphi 0, %s34
      %s56 = sphi 0, %s58
      %s59 = sphi 0, %s56
      %s60 = sphi 0, %s59
      %s76 = sphi 0, %s60
      %s80 = sphi 0, %s80
      %s82 = sphi 0, %s80
      %s83 = sphi 0, %s82
      %s97 = sphi 0, %s83
      %s101 = sphi 0, %s101
      %s103 = sphi 0, %s101
      %s104 = sphi 0, %s103
      %s118 = sphi 0, %s104
      %s122 = sphi 0, %s122
      %s124 = sphi 0, %s122
      %s125 = sphi 0, %s124
      %s139 = sphi 0, %s125
      %s145 = sphi 0, %s147
      %s148 = sphi 0, %s145
      %s149 = sphi 0, %s148
      %s165 = sphi 0, %s149
    $region4: #{tpu_custom_call.1} parent=1 // loop_header_branch
      %23 = sbr.rel (%p21) target = $region8
    $region5: #{tpu_custom_call.1} parent=1 // loop_body
      %s25 = ssub.s32 %s20, 1
      %s26 = ssub.s32 %s20, 2
      %s27 = sadd.s32 %s20, 1
      %s28 = ssub.s32 %s20, %s27
      %p29 = scmp.eq.s32.totalorder %s28, 0
      %s31 = sadd.s32 %s30, 1
      %s32 = scalar_select %p29, %s30, %s31
      %p35 = pneg %p29
      %p36 = scmp.eq.s32.totalorder %s20, 1
      %p37 = por %p35, %p36
      %p38 = scmp.ne.s32.totalorder %s30, %s33
      %p39 = scmp.eq.s32.totalorder %s20, 0
      %p40 = por %p38, %p39
      %p41 = scmp.ne.s32.totalorder %s30, %s33
      %p42 = scmp.eq.s32.totalorder %s25, 1
      %p43 = por %p41, %p42
      %p44 = scmp.ne.s32.totalorder %s33, %s34
      %p45 = scmp.eq.s32.totalorder %s25, 0
      %p46 = por %p44, %p45
      %p47 = scmp.ne.s32.totalorder %s33, %s34
      %p48 = scmp.eq.s32.totalorder %s26, 1
      %p49 = por %p47, %p48
      %p51 = scmp.ne.s32.totalorder %s34, %s50
      %p52 = scmp.eq.s32.totalorder %s26, 0
      %p53 = por %p51, %p52
      %s54 = ssub.s32 %s20, %s27
      %p55 = scmp.eq.s32.totalorder %s54, 0
      %s57 = sadd.s32 %s56, 1
      %s58 = scalar_select %p55, %s56, %s57
      %p61 = pneg %p55
      %p62 = scmp.eq.s32.totalorder %s20, 1
      %p63 = por %p61, %p62
      %p64 = scmp.ne.s32.totalorder %s56, %s59
      %p65 = scmp.eq.s32.totalorder %s20, 0
      %p66 = por %p64, %p65
      %p67 = scmp.ne.s32.totalorder %s56, %s59
      %p68 = scmp.eq.s32.totalorder %s25, 1
      %p69 = por %p67, %p68
      %p70 = scmp.ne.s32.totalorder %s59, %s60
      %p71 = scmp.eq.s32.totalorder %s25, 0
      %p72 = por %p70, %p71
      %p73 = scmp.ne.s32.totalorder %s59, %s60
      %p74 = scmp.eq.s32.totalorder %s26, 1
      %p75 = por %p73, %p74
      %p77 = scmp.ne.s32.totalorder %s60, %s76
      %p78 = scmp.eq.s32.totalorder %s26, 0
      %p79 = por %p77, %p78
      %s81 = sadd.s32 %s80, 1
      %p84 = scmp.eq.s32.totalorder %s20, 1
      %p85 = scmp.ne.s32.totalorder %s80, %s82
      %p86 = scmp.eq.s32.totalorder %s20, 0
      %p87 = por %p85, %p86
      %p88 = scmp.ne.s32.totalorder %s80, %s82
      %p89 = scmp.eq.s32.totalorder %s25, 1
      %p90 = por %p88, %p89
      %p91 = scmp.ne.s32.totalorder %s82, %s83
      %p92 = scmp.eq.s32.totalorder %s25, 0
      %p93 = por %p91, %p92
      %p94 = scmp.ne.s32.totalorder %s82, %s83
      %p95 = scmp.eq.s32.totalorder %s26, 1
      %p96 = por %p94, %p95
      %p98 = scmp.ne.s32.totalorder %s83, %s97
      %p99 = scmp.eq.s32.totalorder %s26, 0
      %p100 = por %p98, %p99
      %s102 = sadd.s32 %s101, 1
      %p105 = scmp.eq.s32.totalorder %s20, 1
      %p106 = scmp.ne.s32.totalorder %s101, %s103
      %p107 = scmp.eq.s32.totalorder %s20, 0
      %p108 = por %p106, %p107
      %p109 = scmp.ne.s32.totalorder %s101, %s103
      %p110 = scmp.eq.s32.totalorder %s25, 1
      %p111 = por %p109, %p110
      %p112 = scmp.ne.s32.totalorder %s103, %s104
      %p113 = scmp.eq.s32.totalorder %s25, 0
      %p114 = por %p112, %p113
      %p115 = scmp.ne.s32.totalorder %s103, %s104
      %p116 = scmp.eq.s32.totalorder %s26, 1
      %p117 = por %p115, %p116
      %p119 = scmp.ne.s32.totalorder %s104, %s118
      %p120 = scmp.eq.s32.totalorder %s26, 0
      %p121 = por %p119, %p120
      %s123 = sadd.s32 %s122, 1
      %p126 = scmp.eq.s32.totalorder %s20, 1
      %p127 = scmp.ne.s32.totalorder %s122, %s124
      %p128 = scmp.eq.s32.totalorder %s20, 0
      %p129 = por %p127, %p128
      %p130 = scmp.ne.s32.totalorder %s122, %s124
      %p131 = scmp.eq.s32.totalorder %s25, 1
      %p132 = por %p130, %p131
      %p133 = scmp.ne.s32.totalorder %s124, %s125
      %p134 = scmp.eq.s32.totalorder %s25, 0
      %p135 = por %p133, %p134
      %p136 = scmp.ne.s32.totalorder %s124, %s125
      %p137 = scmp.eq.s32.totalorder %s26, 1
      %p138 = por %p136, %p137
      %p140 = scmp.ne.s32.totalorder %s125, %s139
      %p141 = scmp.eq.s32.totalorder %s26, 0
      %p142 = por %p140, %p141
      %s143 = ssub.s32 %s20, %s27
      %p144 = scmp.eq.s32.totalorder %s143, 0
      %s146 = sadd.s32 %s145, 1
      %s147 = scalar_select %p144, %s145, %s146
      %p150 = pneg %p144
      %p151 = scmp.eq.s32.totalorder %s20, 1
      %p152 = por %p150, %p151
      %p153 = scmp.ne.s32.totalorder %s145, %s148
      %p154 = scmp.eq.s32.totalorder %s20, 0
      %p155 = por %p153, %p154
      %p156 = scmp.ne.s32.totalorder %s145, %s148
      %p157 = scmp.eq.s32.totalorder %s25, 1
      %p158 = por %p156, %p157
      %p159 = scmp.ne.s32.totalorder %s148, %s149
      %p160 = scmp.eq.s32.totalorder %s25, 0
      %p161 = por %p159, %p160
      %p162 = scmp.ne.s32.totalorder %s148, %s149
      %p163 = scmp.eq.s32.totalorder %s26, 1
      %p164 = por %p162, %p163
      %p166 = scmp.ne.s32.totalorder %s149, %s165
      %p167 = scmp.eq.s32.totalorder %s26, 0
      %p168 = por %p166, %p167
      %p169 = scmp.le.s32.totalorder 1, %s20
      %p170 = scmp.lt.s32.totalorder %s20, 3
      %p171 = pnand %p169, %p170
      %p172 = pneg %p171
      // Predicated region
      $region9: #{tpu_custom_call.1} parent=5 // pred_check
        _
      $region10: #{tpu_custom_call.1} parent=5 // pred_check_branch
        %174 = sbr.rel (%p171) target = $region12
      $region11: #{tpu_custom_call.1} parent=5 // pred_region
        %s175 = ssub.s32 %s20, 1
        // Predicated region
        $region13: #{tpu_custom_call.1} parent=11 // pred_check
          %p176 = pneg %p93
        $region14: #{tpu_custom_call.1} parent=11 // pred_check_branch
          %178 = sbr.rel (%p176) target = $region16
        $region15: #{tpu_custom_call.1} parent=11 // pred_region
          _
        $region16: #{tpu_custom_call.1} parent=11 // pred_fallthru
          _
        // Predicated region
        $region17: #{tpu_custom_call.1} parent=11 // pred_check
          %p179 = pneg %p114
        $region18: #{tpu_custom_call.1} parent=11 // pred_check_branch
          %181 = sbr.rel (%p179) target = $region20
        $region19: #{tpu_custom_call.1} parent=11 // pred_region
          _
        $region20: #{tpu_custom_call.1} parent=11 // pred_fallthru
          _
        // Predicated region
        $region21: #{tpu_custom_call.1} parent=11 // pred_check
          %p182 = pneg %p135
        $region22: #{tpu_custom_call.1} parent=11 // pred_check_branch
          %184 = sbr.rel (%p182) target = $region24
        $region23: #{tpu_custom_call.1} parent=11 // pred_region
          _
        $region24: #{tpu_custom_call.1} parent=11 // pred_fallthru
          _
      $region12: #{tpu_custom_call.1} parent=5 // pred_fallthru
        _
      %p185 = scmp.lt.s32.totalorder %s20, 2
      // Predicated region
      $region25: #{tpu_custom_call.1} parent=5 // pred_check
        %p186 = pneg %p185
      $region26: #{tpu_custom_call.1} parent=5 // pred_check_branch
        %188 = sbr.rel (%p186) target = $region28
      $region27: #{tpu_custom_call.1} parent=5 // pred_region
        // Predicated region
        $region29: #{tpu_custom_call.1} parent=27 // pred_check
          %p189 = pneg %p40
        $region30: #{tpu_custom_call.1} parent=27 // pred_check_branch
          %191 = sbr.rel (%p189) target = $region32
        $region31: #{tpu_custom_call.1} parent=27 // pred_region
          %s192 = sand.u32 %s30, 1
          %s193 = scalar_lea.sflag [#allocation6], %s192
          %s194 = sand.u32 %s30, 1
          %s195 = smul.addr %s194, 128
          %s196 = scalar_lea.vmem [#allocation5], %s195
          %s197 = smul.u32 32, %s20
          %s199 = ssub.s32 2048, 2048
          %200 = vsyncadd %s193, %s199
          %s201 = smul.addr %s197, 64
          %s202 = scalar_lea.hbm %s0, %s201
          %s203 = sshll.u32 %s196, 4
          %s204 = int_to_ptr.vmem [resolvable:$true] %s203
          %209 = dma.hbm_to_vmem [thread:$0]  %s202, 2048, %s204, %s193, 64, 64, 4
        $region32: #{tpu_custom_call.1} parent=27 // pred_fallthru
          _
        // Predicated region
        $region33: #{tpu_custom_call.1} parent=27 // pred_check
          %p210 = pneg %p66
        $region34: #{tpu_custom_call.1} parent=27 // pred_check_branch
          %212 = sbr.rel (%p210) target = $region36
        $region35: #{tpu_custom_call.1} parent=27 // pred_region
          %s213 = sand.u32 %s56, 1
          %s214 = scalar_lea.sflag [#allocation8], %s213
          %s215 = sand.u32 %s56, 1
          %s216 = smul.addr %s215, 512
          %s217 = scalar_lea.vmem [#allocation7], %s216
          %s219 = ssub.s32 8192, 8192
          %220 = vsyncadd %s214, %s219
          %s221 = smul.addr %s20, 64
          %s222 = smul.addr %s221, 128
          %s223 = scalar_lea.hbm %s1, %s222
          %s224 = sshll.u32 %s217, 4
          %s225 = int_to_ptr.vmem [resolvable:$true] %s224
          %230 = dma.hbm_to_vmem [thread:$0]  %s223, 8192, %s225, %s214, 256, 256, 16
        $region36: #{tpu_custom_call.1} parent=27 // pred_fallthru
          _
      $region28: #{tpu_custom_call.1} parent=5 // pred_fallthru
        _
      %p231 = scmp.le.s32.totalorder 1, %s20
      %p232 = scmp.lt.s32.totalorder %s20, 3
      %p233 = pnand %p231, %p232
      %p234 = pneg %p233
      // Predicated region
      $region37: #{tpu_custom_call.1} parent=5 // pred_check
        _
      $region38: #{tpu_custom_call.1} parent=5 // pred_check_branch
        %236 = sbr.rel (%p233) target = $region40
      $region39: #{tpu_custom_call.1} parent=5 // pred_region
        %s237 = ssub.s32 %s20, 1
        %s238 = sand.u32 %s33, 1
        %s239 = scalar_lea.sflag [#allocation6], %s238
        %s240 = sand.u32 %s33, 1
        %s241 = smul.addr %s240, 128
        %s242 = scalar_lea.vmem [#allocation5], %s241
        // Predicated region
        $region41: #{tpu_custom_call.1} parent=39 // pred_check
          %p243 = pneg %p46
        $region42: #{tpu_custom_call.1} parent=39 // pred_check_branch
          %245 = sbr.rel (%p243) target = $region44
        $region43: #{tpu_custom_call.1} parent=39 // pred_region
          %246 = dma.done %s239, 2048
        $region44: #{tpu_custom_call.1} parent=39 // pred_fallthru
          _
        %s247 = sand.u32 %s59, 1
        %s248 = scalar_lea.sflag [#allocation8], %s247
        %s249 = sand.u32 %s59, 1
        %s250 = smul.addr %s249, 512
        %s251 = scalar_lea.vmem [#allocation7], %s250
        // Predicated region
        $region45: #{tpu_custom_call.1} parent=39 // pred_check
          %p252 = pneg %p72
        $region46: #{tpu_custom_call.1} parent=39 // pred_check_branch
          %254 = sbr.rel (%p252) target = $region48
        $region47: #{tpu_custom_call.1} parent=39 // pred_region
          %255 = dma.done %s248, 8192
        $region48: #{tpu_custom_call.1} parent=39 // pred_fallthru
          _
        %s256 = sand.u32 %s33, 1
        %s257 = scalar_lea.sflag [#allocation6], %s256
        %s258 = sand.u32 %s33, 1
        %s259 = smul.addr %s258, 128
        %s260 = scalar_lea.vmem [#allocation5], %s259
        %p261 = pneg %p46
        %p262 = pneg %p43
        %s263 = sand.u32 %s59, 1
        %s264 = scalar_lea.sflag [#allocation8], %s263
        %s265 = sand.u32 %s59, 1
        %s266 = smul.addr %s265, 512
        %s267 = scalar_lea.vmem [#allocation7], %s266
        %p268 = pneg %p72
        %p269 = pneg %p69
        %p270 = pneg %p93
        %p271 = pneg %p90
        %p272 = pneg %p114
        %p273 = pneg %p111
        %p274 = pneg %p135
        %p275 = pneg %p132
        %p276 = pneg %p161
        %p277 = pneg %p158
        %s278 = smul.u32 4, %s25
        %p279 = scmp.lt.s32.totalorder %s278, 7
        %s280 = scalar_select %p279, %s278, 7
        %s281 = smul.addr %s280, 8
        %s282 = scalar_lea.vmem %s8, %s281
        %s283 = smul.u32 32, %s25
        %s284 = smul.u32 4, %s25
        %p285 = scmp.lt.s32.totalorder %s284, 7
        %s286 = scalar_select %p285, %s284, 7
        %s287 = smul.addr %s286, 8
        %s288 = scalar_lea.vmem %s8, %s287
        %s289 = smul.u32 4, %s25
        %p291 = scmp.eq.s32.totalorder %s25, 0
        // Predicated region
        $region49: #{tpu_custom_call.1} parent=39 // pred_check
          %p292 = pneg %p291
        $region50: #{tpu_custom_call.1} parent=39 // pred_check_branch
          %294 = sbr.rel (%p292) target = $region52
        $region51: #{tpu_custom_call.1} parent=39 // pred_region
          $region53: #{tpu_custom_call.1} parent=51
            #allocation9 [shape = 's32[1]{0}', space=sflag, size = 0x4, scoped, tag = 'scoped memory for tpu_custom_call.1']
            #allocation11 [shape = 'u32[9]{0}', space=smem, size = 0x24, scoped, tag = 'DMA stride descriptor']
            %s296 = sshll.u32 1, 14
            %s297 = sxor.u32 4294967295, %s296
            %s299 = sld [smem:[#allocation0]]
            %s300 = sadd.s32 2, %s299
            %s302 = sshll.u32 7, 26
            %s303 = sxor.u32 4294967295, %s302
            %s304 = sand.u32 0, %s303
            %s305 = sshll.u32 %s300, 26
            %s306 = sor.u32 %s304, %s305
            %s307 = sshll.u32 [#allocation2], 4
            %s308 = int_to_ptr.vmem [resolvable:$true] %s307
            %311 = sst [smem:[#allocation11]] 384
            %s312 = scalar_lea.smem [#allocation11], 1
            %313 = sst [smem:[%s312]] 384
            %s314 = scalar_lea.smem [#allocation11], 2
            %315 = sst [smem:[%s314]] 3
            %s316 = scalar_lea.smem [#allocation11], 3
            %317 = sst [smem:[%s316]] 64
            %s318 = scalar_lea.smem [#allocation11], 4
            %319 = sst [smem:[%s318]] 128
            %s320 = scalar_lea.smem [#allocation11], 5
            %321 = sst [smem:[%s320]] 2
            %s322 = scalar_lea.smem [#allocation11], 6
            %323 = sst [smem:[%s322]] 192
            %s324 = scalar_lea.smem [#allocation11], 7
            %325 = sst [smem:[%s324]] 64
            %s326 = scalar_lea.smem [#allocation11], 8
            %327 = sst [smem:[%s326]] 4
            %329 = dma.general %s2, 3072, %s308, [#allocation9], [#allocation10], [#allocation11], %s306, 0
            %s330 = smul.u32 4, 16
            %s331 = smul.u32 %s330, 3
            %s332 = sshll.u32 %s331, 4
            %333 = dma.done [#allocation9], %s332
          $region54: #{tpu_custom_call.1} parent=51
            #allocation12 [shape = 's32[1]{0}', space=sflag, size = 0x4, scoped, tag = 'scoped memory for tpu_custom_call.1']
            %p335 = scmp.lt.u32.totalorder 4, 8
            %p336 = pneg %p335
            // Predicated region
            $region55: #{tpu_custom_call.1} parent=54 // pred_check
              _
            $region56: #{tpu_custom_call.1} parent=54 // pred_check_branch
              %338 = sbr.rel (%p335) target = $region58
            $region57: #{tpu_custom_call.1} parent=54 // pred_region
              %s415 = sand.u32 4, 7
              %p416 = scmp.eq.s32.totalorder %s415, 0
              %p417 = pneg %p416
              // Predicated region
              $region70: #{tpu_custom_call.1} parent=57 // pred_check
                _
              $region71: #{tpu_custom_call.1} parent=57 // pred_check_branch
                %419 = sbr.rel (%p416) target = $region73
              $region72: #{tpu_custom_call.1} parent=57 // pred_region
                %s420 = sand.u32 4, 7
                %s421 = ssub.s32 4, %s420
                %s422 = scalar_lea.vmem %s4, %s421
                %s423 = ssub.s32 4, %s420
                %s424 = scalar_lea.vmem [#allocation3], %s423
                loop: start=0, step=1, limit=1
                $region74: #{tpu_custom_call.1} parent=72 // loop_pre_header
                  _
                $region75: #{tpu_custom_call.1} parent=72 // loop_header
                  %s426 = sphi 0, %s430
                  %p427 = scmp.ge.s32.totalorder %s426, 1
                  %s431 = sphi %s4, %s4
                  %s432 = sphi [#allocation3], [#allocation3]
                $region76: #{tpu_custom_call.1} parent=72 // loop_header_branch
                  %429 = sbr.rel (%p427) target = $region80
                $region77: #{tpu_custom_call.1} parent=72 // loop_body
                  _
                $region78: #{tpu_custom_call.1} parent=72 // loop_footer
                  %s430 = sadd.s32 1, %s426
                $region79: #{tpu_custom_call.1} parent=72 // loop_footer_branch
                  %425 = sbr.rel target = $region75
                $region80: #{tpu_custom_call.1} parent=72 // loop_exit
                  _
                %s433 = sshllo.u32 0, %s420
                loop: start=0, step=1, limit=1
                $region81: #{tpu_custom_call.1} parent=72 // loop_pre_header
                  _
                $region82: #{tpu_custom_call.1} parent=72 // loop_header
                  %s435 = sphi 0, %s439
                  %p436 = scmp.ge.s32.totalorder %s435, 1
                  %s440 = sphi %s422, %s422
                  %s441 = sphi %s424, %s424
                $region83: #{tpu_custom_call.1} parent=72 // loop_header_branch
                  %438 = sbr.rel (%p436) target = $region87
                $region84: #{tpu_custom_call.1} parent=72 // loop_body
                  %v442 = vld [vmem:[%s440] sm:%s433]
                  %443 = vst [vmem:[%s441] sm:%s433] %v442
                  %v444 = vld [vmem:[%s440 + $0x8] sm:%s433]
                  %445 = vst [vmem:[%s441 + $0x4] sm:%s433] %v444
                  %v446 = vld [vmem:[%s440 + $0x4] sm:%s433]
                  %447 = vst [vmem:[%s441 + $0x8] sm:%s433] %v446
                  %v448 = vld [vmem:[%s440 + $0xc] sm:%s433]
                  %449 = vst [vmem:[%s441 + $0xc] sm:%s433] %v448
                  %v450 = vld [vmem:[%s440 + $0x10] sm:%s433]
                  %451 = vst [vmem:[%s441 + $0x10] sm:%s433] %v450
                  %v452 = vld [vmem:[%s440 + $0x18] sm:%s433]
                  %453 = vst [vmem:[%s441 + $0x14] sm:%s433] %v452
                  %v454 = vld [vmem:[%s440 + $0x14] sm:%s433]
                  %455 = vst [vmem:[%s441 + $0x18] sm:%s433] %v454
                  %v456 = vld [vmem:[%s440 + $0x1c] sm:%s433]
                  %457 = vst [vmem:[%s441 + $0x1c] sm:%s433] %v456
                  %v458 = vld [vmem:[%s440 + $0x20] sm:%s433]
                  %459 = vst [vmem:[%s441 + $0x20] sm:%s433] %v458
                  %v460 = vld [vmem:[%s440 + $0x28] sm:%s433]
                  %461 = vst [vmem:[%s441 + $0x24] sm:%s433] %v460
                  %v462 = vld [vmem:[%s440 + $0x24] sm:%s433]
                  %463 = vst [vmem:[%s441 + $0x28] sm:%s433] %v462
                  %v464 = vld [vmem:[%s440 + $0x2c] sm:%s433]
                  %465 = vst [vmem:[%s441 + $0x2c] sm:%s433] %v464
                  %v466 = vld [vmem:[%s440 + $0x30] sm:%s433]
                  %467 = vst [vmem:[%s441 + $0x30] sm:%s433] %v466
                  %v468 = vld [vmem:[%s440 + $0x38] sm:%s433]
                  %469 = vst [vmem:[%s441 + $0x34] sm:%s433] %v468
                  %v470 = vld [vmem:[%s440 + $0x34] sm:%s433]
                  %471 = vst [vmem:[%s441 + $0x38] sm:%s433] %v470
                  %v472 = vld [vmem:[%s440 + $0x3c] sm:%s433]
                  %473 = vst [vmem:[%s441 + $0x3c] sm:%s433] %v472
                  %v474 = vld [vmem:[%s440 + $0x40] sm:%s433]
                  %475 = vst [vmem:[%s441 + $0x40] sm:%s433] %v474
                  %v476 = vld [vmem:[%s440 + $0x48] sm:%s433]
                  %477 = vst [vmem:[%s441 + $0x44] sm:%s433] %v476
                  %v478 = vld [vmem:[%s440 + $0x44] sm:%s433]
                  %479 = vst [vmem:[%s441 + $0x48] sm:%s433] %v478
                  %v480 = vld [vmem:[%s440 + $0x4c] sm:%s433]
                  %481 = vst [vmem:[%s441 + $0x4c] sm:%s433] %v480
                  %v482 = vld [vmem:[%s440 + $0x50] sm:%s433]
                  %483 = vst [vmem:[%s441 + $0x50] sm:%s433] %v482
                  %v484 = vld [vmem:[%s440 + $0x58] sm:%s433]
                  %485 = vst [vmem:[%s441 + $0x54] sm:%s433] %v484
                  %v486 = vld [vmem:[%s440 + $0x54] sm:%s433]
                  %487 = vst [vmem:[%s441 + $0x58] sm:%s433] %v486
                  %v488 = vld [vmem:[%s440 + $0x5c] sm:%s433]
                  %489 = vst [vmem:[%s441 + $0x5c] sm:%s433] %v488
                  %v490 = vld [vmem:[%s440 + $0x60] sm:%s433]
                  %491 = vst [vmem:[%s441 + $0x60] sm:%s433] %v490
                  %v492 = vld [vmem:[%s440 + $0x68] sm:%s433]
                  %493 = vst [vmem:[%s441 + $0x64] sm:%s433] %v492
                  %v494 = vld [vmem:[%s440 + $0x64] sm:%s433]
                  %495 = vst [vmem:[%s441 + $0x68] sm:%s433] %v494
                  %v496 = vld [vmem:[%s440 + $0x6c] sm:%s433]
                  %497 = vst [vmem:[%s441 + $0x6c] sm:%s433] %v496
                  %v498 = vld [vmem:[%s440 + $0x70] sm:%s433]
                  %499 = vst [vmem:[%s441 + $0x70] sm:%s433] %v498
                  %v500 = vld [vmem:[%s440 + $0x78] sm:%s433]
                  %501 = vst [vmem:[%s441 + $0x74] sm:%s433] %v500
                  %v502 = vld [vmem:[%s440 + $0x74] sm:%s433]
                  %503 = vst [vmem:[%s441 + $0x78] sm:%s433] %v502
                  %v504 = vld [vmem:[%s440 + $0x7c] sm:%s433]
                  %505 = vst [vmem:[%s441 + $0x7c] sm:%s433] %v504
                $region85: #{tpu_custom_call.1} parent=72 // loop_footer
                  %s439 = sadd.s32 1, %s435
                $region86: #{tpu_custom_call.1} parent=72 // loop_footer_branch
                  %434 = sbr.rel target = $region82
                $region87: #{tpu_custom_call.1} parent=72 // loop_exit
                  _
              $region73: #{tpu_custom_call.1} parent=57 // pred_fallthru
                _
            $region58: #{tpu_custom_call.1} parent=54 // pred_fallthru
              _
            // Predicated region
            $region59: #{tpu_custom_call.1} parent=54 // pred_check
              %p339 = pneg %p335
            $region60: #{tpu_custom_call.1} parent=54 // pred_check_branch
              %341 = sbr.rel (%p339) target = $region62
            $region61: #{tpu_custom_call.1} parent=54 // pred_region
              %s342 = sshllo.u32 0, 4
              loop: start=0, step=1, limit=1
              $region63: #{tpu_custom_call.1} parent=61 // loop_pre_header
                _
              $region64: #{tpu_custom_call.1} parent=61 // loop_header
                %s344 = sphi 0, %s348
                %p345 = scmp.ge.s32.totalorder %s344, 1
                %s349 = sphi %s4, %s4
                %s350 = sphi [#allocation3], [#allocation3]
              $region65: #{tpu_custom_call.1} parent=61 // loop_header_branch
                %347 = sbr.rel (%p345) target = $region69
              $region66: #{tpu_custom_call.1} parent=61 // loop_body
                %v351 = vld [vmem:[%s349] sm:%s342]
                %352 = vst [vmem:[%s350] sm:%s342] %v351
                %v353 = vld [vmem:[%s349 + $0x8] sm:%s342]
                %354 = vst [vmem:[%s350 + $0x4] sm:%s342] %v353
                %v355 = vld [vmem:[%s349 + $0x4] sm:%s342]
                %356 = vst [vmem:[%s350 + $0x8] sm:%s342] %v355
                %v357 = vld [vmem:[%s349 + $0xc] sm:%s342]
                %358 = vst [vmem:[%s350 + $0xc] sm:%s342] %v357
                %v359 = vld [vmem:[%s349 + $0x10] sm:%s342]
                %360 = vst [vmem:[%s350 + $0x10] sm:%s342] %v359
                %v361 = vld [vmem:[%s349 + $0x18] sm:%s342]
                %362 = vst [vmem:[%s350 + $0x14] sm:%s342] %v361
                %v363 = vld [vmem:[%s349 + $0x14] sm:%s342]
                %364 = vst [vmem:[%s350 + $0x18] sm:%s342] %v363
                %v365 = vld [vmem:[%s349 + $0x1c] sm:%s342]
                %366 = vst [vmem:[%s350 + $0x1c] sm:%s342] %v365
                %v367 = vld [vmem:[%s349 + $0x20] sm:%s342]
                %368 = vst [vmem:[%s350 + $0x20] sm:%s342] %v367
                %v369 = vld [vmem:[%s349 + $0x28] sm:%s342]
                %370 = vst [vmem:[%s350 + $0x24] sm:%s342] %v369
                %v371 = vld [vmem:[%s349 + $0x24] sm:%s342]
                %372 = vst [vmem:[%s350 + $0x28] sm:%s342] %v371
                %v373 = vld [vmem:[%s349 + $0x2c] sm:%s342]
                %374 = vst [vmem:[%s350 + $0x2c] sm:%s342] %v373
                %v375 = vld [vmem:[%s349 + $0x30] sm:%s342]
                %376 = vst [vmem:[%s350 + $0x30] sm:%s342] %v375
                %v377 = vld [vmem:[%s349 + $0x38] sm:%s342]
                %378 = vst [vmem:[%s350 + $0x34] sm:%s342] %v377
                %v379 = vld [vmem:[%s349 + $0x34] sm:%s342]
                %380 = vst [vmem:[%s350 + $0x38] sm:%s342] %v379
                %v381 = vld [vmem:[%s349 + $0x3c] sm:%s342]
                %382 = vst [vmem:[%s350 + $0x3c] sm:%s342] %v381
                %v383 = vld [vmem:[%s349 + $0x40] sm:%s342]
                %384 = vst [vmem:[%s350 + $0x40] sm:%s342] %v383
                %v385 = vld [vmem:[%s349 + $0x48] sm:%s342]
                %386 = vst [vmem:[%s350 + $0x44] sm:%s342] %v385
                %v387 = vld [vmem:[%s349 + $0x44] sm:%s342]
                %388 = vst [vmem:[%s350 + $0x48] sm:%s342] %v387
                %v389 = vld [vmem:[%s349 + $0x4c] sm:%s342]
                %390 = vst [vmem:[%s350 + $0x4c] sm:%s342] %v389
                %v391 = vld [vmem:[%s349 + $0x50] sm:%s342]
                %392 = vst [vmem:[%s350 + $0x50] sm:%s342] %v391
                %v393 = vld [vmem:[%s349 + $0x58] sm:%s342]
                %394 = vst [vmem:[%s350 + $0x54] sm:%s342] %v393
                %v395 = vld [vmem:[%s349 + $0x54] sm:%s342]
                %396 = vst [vmem:[%s350 + $0x58] sm:%s342] %v395
                %v397 = vld [vmem:[%s349 + $0x5c] sm:%s342]
                %398 = vst [vmem:[%s350 + $0x5c] sm:%s342] %v397
                %v399 = vld [vmem:[%s349 + $0x60] sm:%s342]
                %400 = vst [vmem:[%s350 + $0x60] sm:%s342] %v399
                %v401 = vld [vmem:[%s349 + $0x68] sm:%s342]
                %402 = vst [vmem:[%s350 + $0x64] sm:%s342] %v401
                %v403 = vld [vmem:[%s349 + $0x64] sm:%s342]
                %404 = vst [vmem:[%s350 + $0x68] sm:%s342] %v403
                %v405 = vld [vmem:[%s349 + $0x6c] sm:%s342]
                %406 = vst [vmem:[%s350 + $0x6c] sm:%s342] %v405
                %v407 = vld [vmem:[%s349 + $0x70] sm:%s342]
                %408 = vst [vmem:[%s350 + $0x70] sm:%s342] %v407
                %v409 = vld [vmem:[%s349 + $0x78] sm:%s342]
                %410 = vst [vmem:[%s350 + $0x74] sm:%s342] %v409
                %v411 = vld [vmem:[%s349 + $0x74] sm:%s342]
                %412 = vst [vmem:[%s350 + $0x78] sm:%s342] %v411
                %v413 = vld [vmem:[%s349 + $0x7c] sm:%s342]
                %414 = vst [vmem:[%s350 + $0x7c] sm:%s342] %v413
              $region67: #{tpu_custom_call.1} parent=61 // loop_footer
                %s348 = sadd.s32 1, %s344
              $region68: #{tpu_custom_call.1} parent=61 // loop_footer_branch
                %343 = sbr.rel target = $region64
              $region69: #{tpu_custom_call.1} parent=61 // loop_exit
                _
            $region62: #{tpu_custom_call.1} parent=54 // pred_fallthru
              _
            // Predicated region
            $region88: #{tpu_custom_call.1} parent=54 // pred_check
              _
            $region89: #{tpu_custom_call.1} parent=54 // pred_check_branch
              %508 = sbr.rel (0) target = $region91
            $region90: #{tpu_custom_call.1} parent=54 // pred_region
              %509 = vsyncadd [#allocation12], 2048
            $region91: #{tpu_custom_call.1} parent=54 // pred_fallthru
              _
            %s510 = smul.u32 4, 16
            %s511 = smul.u32 %s510, 2
            %s512 = sshll.u32 %s511, 4
            %513 = dma.done [#allocation12], %s512
          $region92: #{tpu_custom_call.1} parent=51
            #allocation14 [shape = 's32[1]{0}', space=sflag, size = 0x4, scoped, tag = 'scoped memory for tpu_custom_call.1']
            %p515 = scmp.lt.u32.totalorder 128, 8
            %p516 = pneg %p515
            // Predicated region
            $region93: #{tpu_custom_call.1} parent=92 // pred_check
              _
            $region94: #{tpu_custom_call.1} parent=92 // pred_check_branch
              %518 = sbr.rel (%p515) target = $region96
            $region95: #{tpu_custom_call.1} parent=92 // pred_region
              %s533 = sand.u32 128, 7
              %p534 = scmp.eq.s32.totalorder %s533, 0
              // Predicated region
              $region108: #{tpu_custom_call.1} parent=95 // pred_check
                %p535 = pneg %p534
              $region109: #{tpu_custom_call.1} parent=95 // pred_check_branch
                %537 = sbr.rel (%p535) target = $region111
              $region110: #{tpu_custom_call.1} parent=95 // pred_region
                loop: start=0, step=1, limit=1
                $region112: #{tpu_custom_call.1} parent=110 // loop_pre_header
                  _
                $region113: #{tpu_custom_call.1} parent=110 // loop_header
                  %s539 = sphi 0, %s543
                  %p540 = scmp.ge.s32.totalorder %s539, 1
                  %s544 = sphi %s6, %s6
                  %s545 = sphi [#allocation4], [#allocation4]
                $region114: #{tpu_custom_call.1} parent=110 // loop_header_branch
                  %542 = sbr.rel (%p540) target = $region118
                $region115: #{tpu_custom_call.1} parent=110 // loop_body
                  %v546 = vld [vmem:[%s544] sm:$0xff]
                  %547 = vst [vmem:[%s545] sm:$0xff] %v546
                  %v548 = vld [vmem:[%s544 + $0x8] sm:$0xff]
                  %549 = vst [vmem:[%s545 + $0x8] sm:$0xff] %v548
                  %v550 = vld [vmem:[%s544 + $0x10] sm:$0xff]
                  %551 = vst [vmem:[%s545 + $0x10] sm:$0xff] %v550
                  %v552 = vld [vmem:[%s544 + $0x18] sm:$0xff]
                  %553 = vst [vmem:[%s545 + $0x18] sm:$0xff] %v552
                  %v554 = vld [vmem:[%s544 + $0x20] sm:$0xff]
                  %555 = vst [vmem:[%s545 + $0x20] sm:$0xff] %v554
                  %v556 = vld [vmem:[%s544 + $0x28] sm:$0xff]
                  %557 = vst [vmem:[%s545 + $0x28] sm:$0xff] %v556
                  %v558 = vld [vmem:[%s544 + $0x30] sm:$0xff]
                  %559 = vst [vmem:[%s545 + $0x30] sm:$0xff] %v558
                  %v560 = vld [vmem:[%s544 + $0x38] sm:$0xff]
                  %561 = vst [vmem:[%s545 + $0x38] sm:$0xff] %v560
                  %v562 = vld [vmem:[%s544 + $0x40] sm:$0xff]
                  %563 = vst [vmem:[%s545 + $0x40] sm:$0xff] %v562
                  %v564 = vld [vmem:[%s544 + $0x48] sm:$0xff]
                  %565 = vst [vmem:[%s545 + $0x48] sm:$0xff] %v564
                  %v566 = vld [vmem:[%s544 + $0x50] sm:$0xff]
                  %567 = vst [vmem:[%s545 + $0x50] sm:$0xff] %v566
                  %v568 = vld [vmem:[%s544 + $0x58] sm:$0xff]
                  %569 = vst [vmem:[%s545 + $0x58] sm:$0xff] %v568
                  %v570 = vld [vmem:[%s544 + $0x60] sm:$0xff]
                  %571 = vst [vmem:[%s545 + $0x60] sm:$0xff] %v570
                  %v572 = vld [vmem:[%s544 + $0x68] sm:$0xff]
                  %573 = vst [vmem:[%s545 + $0x68] sm:$0xff] %v572
                  %v574 = vld [vmem:[%s544 + $0x70] sm:$0xff]
                  %575 = vst [vmem:[%s545 + $0x70] sm:$0xff] %v574
                  %v576 = vld [vmem:[%s544 + $0x78] sm:$0xff]
                  %577 = vst [vmem:[%s545 + $0x78] sm:$0xff] %v576
                $region116: #{tpu_custom_call.1} parent=110 // loop_footer
                  %s543 = sadd.s32 1, %s539
                $region117: #{tpu_custom_call.1} parent=110 // loop_footer_branch
                  %538 = sbr.rel target = $region113
                $region118: #{tpu_custom_call.1} parent=110 // loop_exit
                  _
              $region111: #{tpu_custom_call.1} parent=95 // pred_fallthru
                _
              %p578 = pneg %p534
              // Predicated region
              $region119: #{tpu_custom_call.1} parent=95 // pred_check
                _
              $region120: #{tpu_custom_call.1} parent=95 // pred_check_branch
                %580 = sbr.rel (%p534) target = $region122
              $region121: #{tpu_custom_call.1} parent=95 // pred_region
                %s581 = sand.u32 128, 7
              $region122: #{tpu_custom_call.1} parent=95 // pred_fallthru
                _
            $region96: #{tpu_custom_call.1} parent=92 // pred_fallthru
              _
            // Predicated region
            $region97: #{tpu_custom_call.1} parent=92 // pred_check
              %p519 = pneg %p515
            $region98: #{tpu_custom_call.1} parent=92 // pred_check_branch
              %521 = sbr.rel (%p519) target = $region100
            $region99: #{tpu_custom_call.1} parent=92 // pred_region
              %s522 = sshllo.u32 0, 128
              loop: start=0, step=1, limit=1
              $region101: #{tpu_custom_call.1} parent=99 // loop_pre_header
                _
              $region102: #{tpu_custom_call.1} parent=99 // loop_header
                %s524 = sphi 0, %s528
                %p525 = scmp.ge.s32.totalorder %s524, 1
                %s529 = sphi %s6, %s6
                %s530 = sphi [#allocation4], [#allocation4]
              $region103: #{tpu_custom_call.1} parent=99 // loop_header_branch
                %527 = sbr.rel (%p525) target = $region107
              $region104: #{tpu_custom_call.1} parent=99 // loop_body
                %v531 = vld [vmem:[%s529] sm:%s522]
                %532 = vst [vmem:[%s530] sm:%s522] %v531
              $region105: #{tpu_custom_call.1} parent=99 // loop_footer
                %s528 = sadd.s32 1, %s524
              $region106: #{tpu_custom_call.1} parent=99 // loop_footer_branch
                %523 = sbr.rel target = $region102
              $region107: #{tpu_custom_call.1} parent=99 // loop_exit
                _
            $region100: #{tpu_custom_call.1} parent=92 // pred_fallthru
              _
            // Predicated region
            $region123: #{tpu_custom_call.1} parent=92 // pred_check
              _
            $region124: #{tpu_custom_call.1} parent=92 // pred_check_branch
              %584 = sbr.rel (0) target = $region126
            $region125: #{tpu_custom_call.1} parent=92 // pred_region
              %585 = vsyncadd [#allocation14], 2048
            $region126: #{tpu_custom_call.1} parent=92 // pred_fallthru
              _
            %s586 = smul.u32 4, 32
            %s587 = smul.u32 %s586, 1
            %s588 = sshll.u32 %s587, 4
            %589 = dma.done [#allocation14], %s588
        $region52: #{tpu_custom_call.1} parent=39 // pred_fallthru
          _
        %v590 = vld [vmem:[%s242] sm:$0xf]
        %v591 = vld [vmem:[%s242 + $0x4] sm:$0xf]
        %v592 = vld [vmem:[%s242 + $0x8] sm:$0xf]
        %v593 = vld [vmem:[%s242 + $0xc] sm:$0xf]
        %v594 = vld [vmem:[%s242 + $0x10] sm:$0xf]
        %v595 = vld [vmem:[%s242 + $0x14] sm:$0xf]
        %v596 = vld [vmem:[%s242 + $0x18] sm:$0xf]
        %v597 = vld [vmem:[%s242 + $0x1c] sm:$0xf]
        %v598 = vld [vmem:[%s242 + $0x20] sm:$0xf]
        %v599 = vld [vmem:[%s242 + $0x24] sm:$0xf]
        %v600 = vld [vmem:[%s242 + $0x28] sm:$0xf]
        %v601 = vld [vmem:[%s242 + $0x2c] sm:$0xf]
        %v602 = vld [vmem:[%s242 + $0x30] sm:$0xf]
        %v603 = vld [vmem:[%s242 + $0x34] sm:$0xf]
        %v604 = vld [vmem:[%s242 + $0x38] sm:$0xf]
        %v605 = vld [vmem:[%s242 + $0x3c] sm:$0xf]
        %v606 = vld [vmem:[%s242 + $0x40] sm:$0xf]
        %v607 = vld [vmem:[%s242 + $0x44] sm:$0xf]
        %v608 = vld [vmem:[%s242 + $0x48] sm:$0xf]
        %v609 = vld [vmem:[%s242 + $0x4c] sm:$0xf]
        %v610 = vld [vmem:[%s242 + $0x50] sm:$0xf]
        %v611 = vld [vmem:[%s242 + $0x54] sm:$0xf]
        %v612 = vld [vmem:[%s242 + $0x58] sm:$0xf]
        %v613 = vld [vmem:[%s242 + $0x5c] sm:$0xf]
        %v614 = vld [vmem:[%s242 + $0x60] sm:$0xf]
        %v615 = vld [vmem:[%s242 + $0x64] sm:$0xf]
        %v616 = vld [vmem:[%s242 + $0x68] sm:$0xf]
        %v617 = vld [vmem:[%s242 + $0x6c] sm:$0xf]
        %v618 = vld [vmem:[%s242 + $0x70] sm:$0xf]
        %v619 = vld [vmem:[%s242 + $0x74] sm:$0xf]
        %v620 = vld [vmem:[%s242 + $0x78] sm:$0xf]
        %v621 = vld [vmem:[%s242 + $0x7c] sm:$0xf]
        %v622 = vld [vmem:[#allocation2] sm:$0xff]
        %v623 = vld [vmem:[#allocation2 + $0x8] sm:$0xff]
        %v624 = vld [vmem:[#allocation2 + $0x10] sm:$0xff]
        %v625 = vld [vmem:[#allocation2 + $0x18] sm:$0xff]
        %v626 = vld [vmem:[#allocation2 + $0x20] sm:$0xff]
        %v627 = vld [vmem:[#allocation2 + $0x28] sm:$0xff]
        %v628 = vld [vmem:[#allocation2 + $0x30] sm:$0xff]
        %v629 = vld [vmem:[#allocation2 + $0x38] sm:$0xff]
        %v630 = vld [vmem:[#allocation2 + $0x40] sm:$0xff]
        %v631 = vld [vmem:[#allocation2 + $0x48] sm:$0xff]
        %v632 = vld [vmem:[#allocation2 + $0x50] sm:$0xff]
        %v633 = vld [vmem:[#allocation2 + $0x58] sm:$0xff]
        %v634 = vld [vmem:[#allocation2 + $0x60] sm:$0xff]
        %v635 = vld [vmem:[#allocation2 + $0x68] sm:$0xff]
        %v636 = vld [vmem:[#allocation2 + $0x70] sm:$0xff]
        %v637 = vld [vmem:[#allocation2 + $0x78] sm:$0xff]
        %v638 = vld [vmem:[#allocation2 + $0x80] sm:$0xff]
        %v639 = vld [vmem:[#allocation2 + $0x88] sm:$0xff]
        %v640 = vld [vmem:[#allocation2 + $0x90] sm:$0xff]
        %v641 = vld [vmem:[#allocation2 + $0x98] sm:$0xff]
        %v642 = vld [vmem:[#allocation2 + $0xa0] sm:$0xff]
        %v643 = vld [vmem:[#allocation2 + $0xa8] sm:$0xff]
        %v644 = vld [vmem:[#allocation2 + $0xb0] sm:$0xff]
        %v645 = vld [vmem:[#allocation2 + $0xb8] sm:$0xff]
        %v646 = vld [vmem:[%s3] sm:$0x7]
        %v648 = vlaneseq
        %v649 = vshrl.u32 %v648, 7
        %v650 = vsub.s32 0, %v649
        %v651 = vrot.slane %v646, %v650
        %v652 = vlaneseq
        %v653 = vshrl.u32 %v652, 7
        %v654 = vsub.s32 1, %v653
        %v655 = vrot.slane %v646, %v654
        %v656 = vlaneseq
        %v657 = vshrl.u32 %v656, 7
        %v658 = vsub.s32 2, %v657
        %v659 = vrot.slane %v646, %v658
        %v695 = vunpack.c.l.b16 %v590
        %v696 = vunpack.c.l.b16 %v591
        %v697 = vunpack.c.l.b16 %v592
        %v698 = vunpack.c.l.b16 %v593
        %v699 = vunpack.c.l.b16 %v594
        %v700 = vunpack.c.l.b16 %v595
        %v701 = vunpack.c.l.b16 %v596
        %v702 = vunpack.c.l.b16 %v597
        %v703 = vunpack.c.l.b16 %v598
        %v704 = vunpack.c.l.b16 %v599
        %v705 = vunpack.c.l.b16 %v600
        %v706 = vunpack.c.l.b16 %v601
        %v707 = vunpack.c.l.b16 %v602
        %v708 = vunpack.c.l.b16 %v603
        %v709 = vunpack.c.l.b16 %v604
        %v710 = vunpack.c.l.b16 %v605
        %v711 = vunpack.c.l.b16 %v606
        %v712 = vunpack.c.l.b16 %v607
        %v713 = vunpack.c.l.b16 %v608
        %v714 = vunpack.c.l.b16 %v609
        %v715 = vunpack.c.l.b16 %v610
        %v716 = vunpack.c.l.b16 %v611
        %v717 = vunpack.c.l.b16 %v612
        %v718 = vunpack.c.l.b16 %v613
        %v719 = vunpack.c.l.b16 %v614
        %v720 = vunpack.c.l.b16 %v615
        %v721 = vunpack.c.l.b16 %v616
        %v722 = vunpack.c.l.b16 %v617
        %v723 = vunpack.c.l.b16 %v618
        %v724 = vunpack.c.l.b16 %v619
        %v725 = vunpack.c.l.b16 %v620
        %v726 = vunpack.c.l.b16 %v621
        %v727 = vpack.c.b16 %v696, %v695
        %v728 = vpack.c.b16 %v698, %v697
        %v729 = vpack.c.b16 %v700, %v699
        %v730 = vpack.c.b16 %v702, %v701
        %v731 = vpack.c.b16 %v704, %v703
        %v732 = vpack.c.b16 %v706, %v705
        %v733 = vpack.c.b16 %v708, %v707
        %v734 = vpack.c.b16 %v710, %v709
        %v735 = vpack.c.b16 %v712, %v711
        %v736 = vpack.c.b16 %v714, %v713
        %v737 = vpack.c.b16 %v716, %v715
        %v738 = vpack.c.b16 %v718, %v717
        %v739 = vpack.c.b16 %v720, %v719
        %v740 = vpack.c.b16 %v722, %v721
        %v741 = vpack.c.b16 %v724, %v723
        %v742 = vpack.c.b16 %v726, %v725
        %759 = vmatprep.subr.bf16.mxu0 %v623
        %760 = vmatpush1.bf16.msra.mxu0 %v622
        %761 = vmatprep.subr.bf16.mxu0 %v626
        %762 = vmatpush1.bf16.msra.mxu0 %v625
        %763 = vmatprep.subr.bf16.mxu0 %v629
        %764 = vmatpush1.bf16.msra.mxu0 %v628
        %765 = vmatprep.subr.bf16.mxu0 %v632
        %766 = vmatpush1.bf16.msra.mxu0 %v631
        %767 = vmatprep.subr.bf16.mxu0 %v635
        %768 = vmatpush1.bf16.msra.mxu0 %v634
        %769 = vmatprep.subr.bf16.mxu0 %v638
        %770 = vmatpush1.bf16.msra.mxu0 %v637
        %771 = vmatprep.subr.bf16.mxu0 %v641
        %772 = vmatpush1.bf16.msra.mxu0 %v640
        %773 = vmatprep.subr.bf16.mxu0 %v644
        %774 = vmatpush1.bf16.msra.mxu0 %v643
        %775 = vmatprep.subr.bf16.mxu0 0
        %776 = vmatpush1.bf16.msra.mxu0 0
        %777 = vmatprep.subr.bf16.mxu0 0
        %778 = vmatpush1.bf16.msra.mxu0 0
        %779 = vmatprep.subr.bf16.mxu0 0
        %780 = vmatpush1.bf16.msra.mxu0 0
        %781 = vmatprep.subr.bf16.mxu0 0
        %782 = vmatpush1.bf16.msra.mxu0 0
        %783 = vmatprep.subr.bf16.mxu0 0
        %784 = vmatpush1.bf16.msra.mxu0 0
        %785 = vmatprep.subr.bf16.mxu0 0
        %786 = vmatpush1.bf16.msra.mxu0 0
        %787 = vmatprep.subr.bf16.mxu0 0
        %788 = vmatpush1.bf16.msra.mxu0 0
        %789 = vmatprep.subr.bf16.mxu0 0
        %790 = vmatpush1.bf16.msra.mxu0 0
        %791 = vmatprep.mubr.bf16.mxu0 0
        %792 = vmatmul.mubr.bf16.gmra.mrb[0].mxu0 %v727
        %v793 = vpop.f32.mrb[0].mxu0
        %v794 = vadd.f32 %v651, %v793
        %v795 = vpop.f32.mrb[0].mxu0
        %v796 = vadd.f32 %v655, %v795
        %v797 = vpop.f32.mrb[0].mxu0
        %v798 = vadd.f32 %v651, %v797
        %v799 = vpop.f32.mrb[0].mxu0
        %v800 = vadd.f32 %v655, %v799
        %801 = vmatprep.mubr.bf16.mxu0 0
        %802 = vmatmul.mubr.bf16.gmra.mrb[0].mxu0 %v728
        %v803 = vpop.f32.mrb[0].mxu0
        %v804 = vadd.f32 %v651, %v803
        %v805 = vpop.f32.mrb[0].mxu0
        %v806 = vadd.f32 %v655, %v805
        %v807 = vpop.f32.mrb[0].mxu0
        %v808 = vadd.f32 %v651, %v807
        %v809 = vpop.f32.mrb[0].mxu0
        %v810 = vadd.f32 %v655, %v809
        %811 = vmatprep.mubr.bf16.mxu0 0
        %812 = vmatmul.mubr.bf16.gmra.mrb[0].mxu0 %v729
        %v813 = vpop.f32.mrb[0].mxu0
        %v814 = vadd.f32 %v651, %v813
        %v815 = vpop.f32.mrb[0].mxu0
        %v816 = vadd.f32 %v655, %v815
        %v817 = vpop.f32.mrb[0].mxu0
        %v818 = vadd.f32 %v651, %v817
        %v819 = vpop.f32.mrb[0].mxu0
        %v820 = vadd.f32 %v655, %v819
        %821 = vmatprep.mubr.bf16.mxu0 0
        %822 = vmatmul.mubr.bf16.gmra.mrb[0].mxu0 %v730
        %v823 = vpop.f32.mrb[0].mxu0
        %v824 = vadd.f32 %v651, %v823
        %v825 = vpop.f32.mrb[0].mxu0
        %v826 = vadd.f32 %v655, %v825
        %v827 = vpop.f32.mrb[0].mxu0
        %v828 = vadd.f32 %v651, %v827
        %v829 = vpop.f32.mrb[0].mxu0
        %v830 = vadd.f32 %v655, %v829
        %831 = vmatprep.mubr.bf16.mxu0 0
        %832 = vmatmul.mubr.bf16.gmra.mrb[0].mxu0 %v731
        %v833 = vpop.f32.mrb[0].mxu0
        %v834 = vadd.f32 %v651, %v833
        %v835 = vpop.f32.mrb[0].mxu0
        %v836 = vadd.f32 %v655, %v835
        %v837 = vpop.f32.mrb[0].mxu0
        %v838 = vadd.f32 %v651, %v837
        %v839 = vpop.f32.mrb[0].mxu0
        %v840 = vadd.f32 %v655, %v839
        %841 = vmatprep.mubr.bf16.mxu0 0
        %842 = vmatmul.mubr.bf16.gmra.mrb[0].mxu0 %v732
        %v843 = vpop.f32.mrb[0].mxu0
        %v844 = vadd.f32 %v651, %v843
        %v845 = vpop.f32.mrb[0].mxu0
        %v846 = vadd.f32 %v655, %v845
        %v847 = vpop.f32.mrb[0].mxu0
        %v848 = vadd.f32 %v651, %v847
        %v849 = vpop.f32.mrb[0].mxu0
        %v850 = vadd.f32 %v655, %v849
        %851 = vmatprep.mubr.bf16.mxu0 0
        %852 = vmatmul.mubr.bf16.gmra.mrb[0].mxu0 %v733
        %v853 = vpop.f32.mrb[0].mxu0
        %v854 = vadd.f32 %v651, %v853
        %v855 = vpop.f32.mrb[0].mxu0
        %v856 = vadd.f32 %v655, %v855
        %v857 = vpop.f32.mrb[0].mxu0
        %v858 = vadd.f32 %v651, %v857
        %v859 = vpop.f32.mrb[0].mxu0
        %v860 = vadd.f32 %v655, %v859
        %861 = vmatprep.mubr.bf16.mxu0 0
        %862 = vmatmul.mubr.bf16.gmra.mrb[0].mxu0 %v734
        %v863 = vpop.f32.mrb[0].mxu0
        %v864 = vadd.f32 %v651, %v863
        %v865 = vpop.f32.mrb[0].mxu0
        %v866 = vadd.f32 %v655, %v865
        %v867 = vpop.f32.mrb[0].mxu0
        %v868 = vadd.f32 %v651, %v867
        %v869 = vpop.f32.mrb[0].mxu0
        %v870 = vadd.f32 %v655, %v869
        %871 = vmatprep.mubr.bf16.mxu0 0
        %872 = vmatmul.mubr.bf16.gmra.mrb[0].mxu0 %v735
        %v873 = vpop.f32.mrb[0].mxu0
        %v874 = vadd.f32 %v651, %v873
        %v875 = vpop.f32.mrb[0].mxu0
        %v876 = vadd.f32 %v655, %v875
        %v877 = vpop.f32.mrb[0].mxu0
        %v878 = vadd.f32 %v651, %v877
        %v879 = vpop.f32.mrb[0].mxu0
        %v880 = vadd.f32 %v655, %v879
        %881 = vmatprep.mubr.bf16.mxu0 0
        %882 = vmatmul.mubr.bf16.gmra.mrb[0].mxu0 %v736
        %v883 = vpop.f32.mrb[0].mxu0
        %v884 = vadd.f32 %v651, %v883
        %v885 = vpop.f32.mrb[0].mxu0
        %v886 = vadd.f32 %v655, %v885
        %v887 = vpop.f32.mrb[0].mxu0
        %v888 = vadd.f32 %v651, %v887
        %v889 = vpop.f32.mrb[0].mxu0
        %v890 = vadd.f32 %v655, %v889
        %891 = vmatprep.mubr.bf16.mxu0 0
        %892 = vmatmul.mubr.bf16.gmra.mrb[0].mxu0 %v737
        %v893 = vpop.f32.mrb[0].mxu0
        %v894 = vadd.f32 %v651, %v893
        %v895 = vpop.f32.mrb[0].mxu0
        %v896 = vadd.f32 %v655, %v895
        %v897 = vpop.f32.mrb[0].mxu0
        %v898 = vadd.f32 %v651, %v897
        %v899 = vpop.f32.mrb[0].mxu0
        %v900 = vadd.f32 %v655, %v899
        %901 = vmatprep.mubr.bf16.mxu0 0
        %902 = vmatmul.mubr.bf16.gmra.mrb[0].mxu0 %v738
        %v903 = vpop.f32.mrb[0].mxu0
        %v904 = vadd.f32 %v651, %v903
        %v905 = vpop.f32.mrb[0].mxu0
        %v906 = vadd.f32 %v655, %v905
        %v907 = vpop.f32.mrb[0].mxu0
        %v908 = vadd.f32 %v651, %v907
        %v909 = vpop.f32.mrb[0].mxu0
        %v910 = vadd.f32 %v655, %v909
        %911 = vmatprep.mubr.bf16.mxu0 0
        %912 = vmatmul.mubr.bf16.gmra.mrb[0].mxu0 %v739
        %v913 = vpop.f32.mrb[0].mxu0
        %v914 = vadd.f32 %v651, %v913
        %v915 = vpop.f32.mrb[0].mxu0
        %v916 = vadd.f32 %v655, %v915
        %v917 = vpop.f32.mrb[0].mxu0
        %v918 = vadd.f32 %v651, %v917
        %v919 = vpop.f32.mrb[0].mxu0
        %v920 = vadd.f32 %v655, %v919
        %921 = vmatprep.mubr.bf16.mxu0 0
        %922 = vmatmul.mubr.bf16.gmra.mrb[0].mxu0 %v740
        %v923 = vpop.f32.mrb[0].mxu0
        %v924 = vadd.f32 %v651, %v923
        %v925 = vpop.f32.mrb[0].mxu0
        %v926 = vadd.f32 %v655, %v925
        %v927 = vpop.f32.mrb[0].mxu0
        %v928 = vadd.f32 %v651, %v927
        %v929 = vpop.f32.mrb[0].mxu0
        %v930 = vadd.f32 %v655, %v929
        %931 = vmatprep.mubr.bf16.mxu0 0
        %932 = vmatmul.mubr.bf16.gmra.mrb[0].mxu0 %v741
        %v933 = vpop.f32.mrb[0].mxu0
        %v934 = vadd.f32 %v651, %v933
        %v935 = vpop.f32.mrb[0].mxu0
        %v936 = vadd.f32 %v655, %v935
        %v937 = vpop.f32.mrb[0].mxu0
        %v938 = vadd.f32 %v651, %v937
        %v939 = vpop.f32.mrb[0].mxu0
        %v940 = vadd.f32 %v655, %v939
        %941 = vmatprep.mubr.bf16.mxu0 0
        %942 = vmatmul.mubr.bf16.gmra.mrb[0].mxu0 %v742
        %v943 = vpop.f32.mrb[0].mxu0
        %v944 = vadd.f32 %v651, %v943
        %v945 = vpop.f32.mrb[0].mxu0
        %v946 = vadd.f32 %v655, %v945
        %v947 = vpop.f32.mrb[0].mxu0
        %v948 = vadd.f32 %v651, %v947
        %v949 = vpop.f32.mrb[0].mxu0
        %v950 = vadd.f32 %v655, %v949
        %951 = vdwg.mxu0
        %952 = vmatprep.subr.bf16.mxu0 0
        %953 = vmatpush1.bf16.msra.mxu0 %v624
        %954 = vmatprep.subr.bf16.mxu0 0
        %955 = vmatpush1.bf16.msra.mxu0 %v627
        %956 = vmatprep.subr.bf16.mxu0 0
        %957 = vmatpush1.bf16.msra.mxu0 %v630
        %958 = vmatprep.subr.bf16.mxu0 0
        %959 = vmatpush1.bf16.msra.mxu0 %v633
        %960 = vmatprep.subr.bf16.mxu0 0
        %961 = vmatpush1.bf16.msra.mxu0 %v636
        %962 = vmatprep.subr.bf16.mxu0 0
        %963 = vmatpush1.bf16.msra.mxu0 %v639
        %964 = vmatprep.subr.bf16.mxu0 0
        %965 = vmatpush1.bf16.msra.mxu0 %v642
        %966 = vmatprep.subr.bf16.mxu0 0
        %967 = vmatpush1.bf16.msra.mxu0 %v645
        %968 = vmatprep.subr.bf16.mxu0 0
        %969 = vmatpush1.bf16.msra.mxu0 0
        %970 = vmatprep.subr.bf16.mxu0 0
        %971 = vmatpush1.bf16.msra.mxu0 0
        %972 = vmatprep.subr.bf16.mxu0 0
        %973 = vmatpush1.bf16.msra.mxu0 0
        %974 = vmatprep.subr.bf16.mxu0 0
        %975 = vmatpush1.bf16.msra.mxu0 0
        %976 = vmatprep.subr.bf16.mxu0 0
        %977 = vmatpush1.bf16.msra.mxu0 0
        %978 = vmatprep.subr.bf16.mxu0 0
        %979 = vmatpush1.bf16.msra.mxu0 0
        %980 = vmatprep.subr.bf16.mxu0 0
        %981 = vmatpush1.bf16.msra.mxu0 0
        %982 = vmatprep.subr.bf16.mxu0 0
        %983 = vmatpush1.bf16.msra.mxu0 0
        %984 = vmatprep.mubr.bf16.mxu0 0
        %985 = vmatmul.mubr.bf16.gmra.mrb[0].mxu0 %v727
        %v986 = vpop.f32.mrb[0].mxu0
        %v987 = vadd.f32 %v659, %v986
        %v988 = vpop.f32.mrb[0].mxu0
        %v989 = vpop.f32.mrb[0].mxu0
        %v990 = vadd.f32 %v659, %v989
        %v991 = vpop.f32.mrb[0].mxu0
        %992 = vmatprep.mubr.bf16.mxu0 0
        %993 = vmatmul.mubr.bf16.gmra.mrb[0].mxu0 %v728
        %v994 = vpop.f32.mrb[0].mxu0
        %v995 = vadd.f32 %v659, %v994
        %v996 = vpop.f32.mrb[0].mxu0
        %v997 = vpop.f32.mrb[0].mxu0
        %v998 = vadd.f32 %v659, %v997
        %v999 = vpop.f32.mrb[0].mxu0
        %1000 = vmatprep.mubr.bf16.mxu0 0
        %1001 = vmatmul.mubr.bf16.gmra.mrb[0].mxu0 %v729
        %v1002 = vpop.f32.mrb[0].mxu0
        %v1003 = vadd.f32 %v659, %v1002
        %v1004 = vpop.f32.mrb[0].mxu0
        %v1005 = vpop.f32.mrb[0].mxu0
        %v1006 = vadd.f32 %v659, %v1005
        %v1007 = vpop.f32.mrb[0].mxu0
        %1008 = vmatprep.mubr.bf16.mxu0 0
        %1009 = vmatmul.mubr.bf16.gmra.mrb[0].mxu0 %v730
        %v1010 = vpop.f32.mrb[0].mxu0
        %v1011 = vadd.f32 %v659, %v1010
        %v1012 = vpop.f32.mrb[0].mxu0
        %v1013 = vpop.f32.mrb[0].mxu0
        %v1014 = vadd.f32 %v659, %v1013
        %v1015 = vpop.f32.mrb[0].mxu0
        %1016 = vmatprep.mubr.bf16.mxu0 0
        %1017 = vmatmul.mubr.bf16.gmra.mrb[0].mxu0 %v731
        %v1018 = vpop.f32.mrb[0].mxu0
        %v1019 = vadd.f32 %v659, %v1018
        %v1020 = vpop.f32.mrb[0].mxu0
        %v1021 = vpop.f32.mrb[0].mxu0
        %v1022 = vadd.f32 %v659, %v1021
        %v1023 = vpop.f32.mrb[0].mxu0
        %1024 = vmatprep.mubr.bf16.mxu0 0
        %1025 = vmatmul.mubr.bf16.gmra.mrb[0].mxu0 %v732
        %v1026 = vpop.f32.mrb[0].mxu0
        %v1027 = vadd.f32 %v659, %v1026
        %v1028 = vpop.f32.mrb[0].mxu0
        %v1029 = vpop.f32.mrb[0].mxu0
        %v1030 = vadd.f32 %v659, %v1029
        %v1031 = vpop.f32.mrb[0].mxu0
        %1032 = vmatprep.mubr.bf16.mxu0 0
        %1033 = vmatmul.mubr.bf16.gmra.mrb[0].mxu0 %v733
        %v1034 = vpop.f32.mrb[0].mxu0
        %v1035 = vadd.f32 %v659, %v1034
        %v1036 = vpop.f32.mrb[0].mxu0
        %v1037 = vpop.f32.mrb[0].mxu0
        %v1038 = vadd.f32 %v659, %v1037
        %v1039 = vpop.f32.mrb[0].mxu0
        %1040 = vmatprep.mubr.bf16.mxu0 0
        %1041 = vmatmul.mubr.bf16.gmra.mrb[0].mxu0 %v734
        %v1042 = vpop.f32.mrb[0].mxu0
        %v1043 = vadd.f32 %v659, %v1042
        %v1044 = vpop.f32.mrb[0].mxu0
        %v1045 = vpop.f32.mrb[0].mxu0
        %v1046 = vadd.f32 %v659, %v1045
        %v1047 = vpop.f32.mrb[0].mxu0
        %1048 = vmatprep.mubr.bf16.mxu0 0
        %1049 = vmatmul.mubr.bf16.gmra.mrb[0].mxu0 %v735
        %v1050 = vpop.f32.mrb[0].mxu0
        %v1051 = vadd.f32 %v659, %v1050
        %v1052 = vpop.f32.mrb[0].mxu0
        %v1053 = vpop.f32.mrb[0].mxu0
        %v1054 = vadd.f32 %v659, %v1053
        %v1055 = vpop.f32.mrb[0].mxu0
        %1056 = vmatprep.mubr.bf16.mxu0 0
        %1057 = vmatmul.mubr.bf16.gmra.mrb[0].mxu0 %v736
        %v1058 = vpop.f32.mrb[0].mxu0
        %v1059 = vadd.f32 %v659, %v1058
        %v1060 = vpop.f32.mrb[0].mxu0
        %v1061 = vpop.f32.mrb[0].mxu0
        %v1062 = vadd.f32 %v659, %v1061
        %v1063 = vpop.f32.mrb[0].mxu0
        %1064 = vmatprep.mubr.bf16.mxu0 0
        %1065 = vmatmul.mubr.bf16.gmra.mrb[0].mxu0 %v737
        %v1066 = vpop.f32.mrb[0].mxu0
        %v1067 = vadd.f32 %v659, %v1066
        %v1068 = vpop.f32.mrb[0].mxu0
        %v1069 = vpop.f32.mrb[0].mxu0
        %v1070 = vadd.f32 %v659, %v1069
        %v1071 = vpop.f32.mrb[0].mxu0
        %1072 = vmatprep.mubr.bf16.mxu0 0
        %1073 = vmatmul.mubr.bf16.gmra.mrb[0].mxu0 %v738
        %v1074 = vpop.f32.mrb[0].mxu0
        %v1075 = vadd.f32 %v659, %v1074
        %v1076 = vpop.f32.mrb[0].mxu0
        %v1077 = vpop.f32.mrb[0].mxu0
        %v1078 = vadd.f32 %v659, %v1077
        %v1079 = vpop.f32.mrb[0].mxu0
        %1080 = vmatprep.mubr.bf16.mxu0 0
        %1081 = vmatmul.mubr.bf16.gmra.mrb[0].mxu0 %v739
        %v1082 = vpop.f32.mrb[0].mxu0
        %v1083 = vadd.f32 %v659, %v1082
        %v1084 = vpop.f32.mrb[0].mxu0
        %v1085 = vpop.f32.mrb[0].mxu0
        %v1086 = vadd.f32 %v659, %v1085
        %v1087 = vpop.f32.mrb[0].mxu0
        %1088 = vmatprep.mubr.bf16.mxu0 0
        %1089 = vmatmul.mubr.bf16.gmra.mrb[0].mxu0 %v740
        %v1090 = vpop.f32.mrb[0].mxu0
        %v1091 = vadd.f32 %v659, %v1090
        %v1092 = vpop.f32.mrb[0].mxu0
        %v1093 = vpop.f32.mrb[0].mxu0
        %v1094 = vadd.f32 %v659, %v1093
        %v1095 = vpop.f32.mrb[0].mxu0
        %1096 = vmatprep.mubr.bf16.mxu0 0
        %1097 = vmatmul.mubr.bf16.gmra.mrb[0].mxu0 %v741
        %v1098 = vpop.f32.mrb[0].mxu0
        %v1099 = vadd.f32 %v659, %v1098
        %v1100 = vpop.f32.mrb[0].mxu0
        %v1101 = vpop.f32.mrb[0].mxu0
        %v1102 = vadd.f32 %v659, %v1101
        %v1103 = vpop.f32.mrb[0].mxu0
        %1104 = vmatprep.mubr.bf16.mxu0 0
        %1105 = vmatmul.mubr.bf16.gmra.mrb[0].mxu0 %v742
        %v1106 = vpop.f32.mrb[0].mxu0
        %v1107 = vadd.f32 %v659, %v1106
        %v1108 = vpop.f32.mrb[0].mxu0
        %v1109 = vpop.f32.mrb[0].mxu0
        %v1110 = vadd.f32 %v659, %v1109
        %v1111 = vpop.f32.mrb[0].mxu0
        %1112 = vdwg.mxu0
        %v1113 = vpack.c.bf16 %v798, %v794
        %v1114 = vpack.c.bf16 %v808, %v804
        %v1115 = vpack.c.bf16 %v818, %v814
        %v1116 = vpack.c.bf16 %v828, %v824
        %v1117 = vpack.c.bf16 %v838, %v834
        %v1118 = vpack.c.bf16 %v848, %v844
        %v1119 = vpack.c.bf16 %v858, %v854
        %v1120 = vpack.c.bf16 %v868, %v864
        %v1121 = vpack.c.bf16 %v878, %v874
        %v1122 = vpack.c.bf16 %v888, %v884
        %v1123 = vpack.c.bf16 %v898, %v894
        %v1124 = vpack.c.bf16 %v908, %v904
        %v1125 = vpack.c.bf16 %v918, %v914
        %v1126 = vpack.c.bf16 %v928, %v924
        %v1127 = vpack.c.bf16 %v938, %v934
        %v1128 = vpack.c.bf16 %v948, %v944
        %v1129 = vpack.c.bf16 %v800, %v796
        %v1130 = vpack.c.bf16 %v810, %v806
        %v1131 = vpack.c.bf16 %v820, %v816
        %v1132 = vpack.c.bf16 %v830, %v826
        %v1133 = vpack.c.bf16 %v840, %v836
        %v1134 = vpack.c.bf16 %v850, %v846
        %v1135 = vpack.c.bf16 %v860, %v856
        %v1136 = vpack.c.bf16 %v870, %v866
        %v1137 = vpack.c.bf16 %v880, %v876
        %v1138 = vpack.c.bf16 %v890, %v886
        %v1139 = vpack.c.bf16 %v900, %v896
        %v1140 = vpack.c.bf16 %v910, %v906
        %v1141 = vpack.c.bf16 %v920, %v916
        %v1142 = vpack.c.bf16 %v930, %v926
        %v1143 = vpack.c.bf16 %v940, %v936
        %v1144 = vpack.c.bf16 %v950, %v946
        %v1145 = vpack.c.bf16 %v990, %v987
        %v1146 = vpack.c.bf16 %v998, %v995
        %v1147 = vpack.c.bf16 %v1006, %v1003
        %v1148 = vpack.c.bf16 %v1014, %v1011
        %v1149 = vpack.c.bf16 %v1022, %v1019
        %v1150 = vpack.c.bf16 %v1030, %v1027
        %v1151 = vpack.c.bf16 %v1038, %v1035
        %v1152 = vpack.c.bf16 %v1046, %v1043
        %v1153 = vpack.c.bf16 %v1054, %v1051
        %v1154 = vpack.c.bf16 %v1062, %v1059
        %v1155 = vpack.c.bf16 %v1070, %v1067
        %v1156 = vpack.c.bf16 %v1078, %v1075
        %v1157 = vpack.c.bf16 %v1086, %v1083
        %v1158 = vpack.c.bf16 %v1094, %v1091
        %v1159 = vpack.c.bf16 %v1102, %v1099
        %v1160 = vpack.c.bf16 %v1110, %v1107
        %1161 = vmatprep.subr.bf16.mxu0 0
        %1162 = vmatpush1.bf16.xpose.msra.mxu0 %v1129
        %1163 = vmatprep.subr.bf16.mxu0 0
        %1164 = vmatpush1.bf16.xpose.msra.mxu0 %v1130
        %1165 = vmatprep.subr.bf16.mxu0 0
        %1166 = vmatpush1.bf16.xpose.msra.mxu0 %v1131
        %1167 = vmatprep.subr.bf16.mxu0 0
        %1168 = vmatpush1.bf16.xpose.msra.mxu0 %v1132
        %1169 = vmatprep.subr.bf16.mxu0 0
        %1170 = vmatpush1.bf16.xpose.msra.mxu0 %v1133
        %1171 = vmatprep.subr.bf16.mxu0 0
        %1172 = vmatpush1.bf16.xpose.msra.mxu0 %v1134
        %1173 = vmatprep.subr.bf16.mxu0 0
        %1174 = vmatpush1.bf16.xpose.msra.mxu0 %v1135
        %1175 = vmatprep.subr.bf16.mxu0 0
        %1176 = vmatpush1.bf16.xpose.msra.mxu0 %v1136
        %1177 = vmatprep.subr.bf16.mxu0 0
        %1178 = vmatpush1.bf16.xpose.msra.mxu0 %v1137
        %1179 = vmatprep.subr.bf16.mxu0 0
        %1180 = vmatpush1.bf16.xpose.msra.mxu0 %v1138
        %1181 = vmatprep.subr.bf16.mxu0 0
        %1182 = vmatpush1.bf16.xpose.msra.mxu0 %v1139
        %1183 = vmatprep.subr.bf16.mxu0 0
        %1184 = vmatpush1.bf16.xpose.msra.mxu0 %v1140
        %1185 = vmatprep.subr.bf16.mxu0 0
        %1186 = vmatpush1.bf16.xpose.msra.mxu0 %v1141
        %1187 = vmatprep.subr.bf16.mxu0 0
        %1188 = vmatpush1.bf16.xpose.msra.mxu0 %v1142
        %1189 = vmatprep.subr.bf16.mxu0 0
        %1190 = vmatpush1.bf16.xpose.msra.mxu0 %v1143
        %1191 = vmatprep.subr.bf16.mxu0 0
        %1192 = vmatpush1.bf16.xpose.msra.mxu0 %v1144
        %1193 = vmatprep.mubr.bf16.mxu0 0
        %1194 = vmatmul.mubr.bf16.gmra.mrb[0].mxu0 %v1113
        %v1195 = vpop.f32.mrb[0].mxu0
        %v1196 = vadd.f32 0.0, %v1195
        %v1197 = vpop.f32.mrb[0].mxu0
        %v1198 = vadd.f32 0.0, %v1197
        %v1199 = vpop.f32.mrb[0].mxu0
        %v1200 = vadd.f32 0.0, %v1199
        %v1201 = vpop.f32.mrb[0].mxu0
        %v1202 = vadd.f32 0.0, %v1201
        %1203 = vmatprep.mubr.bf16.mxu0 0
        %1204 = vmatmul.mubr.bf16.gmra.mrb[0].mxu0 %v1114
        %v1205 = vpop.f32.mrb[0].mxu0
        %v1206 = vadd.f32 0.0, %v1205
        %v1207 = vpop.f32.mrb[0].mxu0
        %v1208 = vadd.f32 0.0, %v1207
        %v1209 = vpop.f32.mrb[0].mxu0
        %v1210 = vadd.f32 0.0, %v1209
        %v1211 = vpop.f32.mrb[0].mxu0
        %v1212 = vadd.f32 0.0, %v1211
        %1213 = vmatprep.mubr.bf16.mxu0 0
        %1214 = vmatmul.mubr.bf16.gmra.mrb[0].mxu0 %v1115
        %v1215 = vpop.f32.mrb[0].mxu0
        %v1216 = vadd.f32 0.0, %v1215
        %v1217 = vpop.f32.mrb[0].mxu0
        %v1218 = vadd.f32 0.0, %v1217
        %v1219 = vpop.f32.mrb[0].mxu0
        %v1220 = vadd.f32 0.0, %v1219
        %v1221 = vpop.f32.mrb[0].mxu0
        %v1222 = vadd.f32 0.0, %v1221
        %1223 = vmatprep.mubr.bf16.mxu0 0
        %1224 = vmatmul.mubr.bf16.gmra.mrb[0].mxu0 %v1116
        %v1225 = vpop.f32.mrb[0].mxu0
        %v1226 = vadd.f32 0.0, %v1225
        %v1227 = vpop.f32.mrb[0].mxu0
        %v1228 = vadd.f32 0.0, %v1227
        %v1229 = vpop.f32.mrb[0].mxu0
        %v1230 = vadd.f32 0.0, %v1229
        %v1231 = vpop.f32.mrb[0].mxu0
        %v1232 = vadd.f32 0.0, %v1231
        %1233 = vmatprep.mubr.bf16.mxu0 0
        %1234 = vmatmul.mubr.bf16.gmra.mrb[0].mxu0 %v1117
        %v1235 = vpop.f32.mrb[0].mxu0
        %v1236 = vadd.f32 0.0, %v1235
        %v1237 = vpop.f32.mrb[0].mxu0
        %v1238 = vadd.f32 0.0, %v1237
        %v1239 = vpop.f32.mrb[0].mxu0
        %v1240 = vadd.f32 0.0, %v1239
        %v1241 = vpop.f32.mrb[0].mxu0
        %v1242 = vadd.f32 0.0, %v1241
        %1243 = vmatprep.mubr.bf16.mxu0 0
        %1244 = vmatmul.mubr.bf16.gmra.mrb[0].mxu0 %v1118
        %v1245 = vpop.f32.mrb[0].mxu0
        %v1246 = vadd.f32 0.0, %v1245
        %v1247 = vpop.f32.mrb[0].mxu0
        %v1248 = vadd.f32 0.0, %v1247
        %v1249 = vpop.f32.mrb[0].mxu0
        %v1250 = vadd.f32 0.0, %v1249
        %v1251 = vpop.f32.mrb[0].mxu0
        %v1252 = vadd.f32 0.0, %v1251
        %1253 = vmatprep.mubr.bf16.mxu0 0
        %1254 = vmatmul.mubr.bf16.gmra.mrb[0].mxu0 %v1119
        %v1255 = vpop.f32.mrb[0].mxu0
        %v1256 = vadd.f32 0.0, %v1255
        %v1257 = vpop.f32.mrb[0].mxu0
        %v1258 = vadd.f32 0.0, %v1257
        %v1259 = vpop.f32.mrb[0].mxu0
        %v1260 = vadd.f32 0.0, %v1259
        %v1261 = vpop.f32.mrb[0].mxu0
        %v1262 = vadd.f32 0.0, %v1261
        %1263 = vmatprep.mubr.bf16.mxu0 0
        %1264 = vmatmul.mubr.bf16.gmra.mrb[0].mxu0 %v1120
        %v1265 = vpop.f32.mrb[0].mxu0
        %v1266 = vadd.f32 0.0, %v1265
        %v1267 = vpop.f32.mrb[0].mxu0
        %v1268 = vadd.f32 0.0, %v1267
        %v1269 = vpop.f32.mrb[0].mxu0
        %v1270 = vadd.f32 0.0, %v1269
        %v1271 = vpop.f32.mrb[0].mxu0
        %v1272 = vadd.f32 0.0, %v1271
        %1273 = vmatprep.mubr.bf16.mxu0 0
        %1274 = vmatmul.mubr.bf16.gmra.mrb[0].mxu0 %v1121
        %v1275 = vpop.f32.mrb[0].mxu0
        %v1276 = vadd.f32 0.0, %v1275
        %v1277 = vpop.f32.mrb[0].mxu0
        %v1278 = vadd.f32 0.0, %v1277
        %v1279 = vpop.f32.mrb[0].mxu0
        %v1280 = vadd.f32 0.0, %v1279
        %v1281 = vpop.f32.mrb[0].mxu0
        %v1282 = vadd.f32 0.0, %v1281
        %1283 = vmatprep.mubr.bf16.mxu0 0
        %1284 = vmatmul.mubr.bf16.gmra.mrb[0].mxu0 %v1122
        %v1285 = vpop.f32.mrb[0].mxu0
        %v1286 = vadd.f32 0.0, %v1285
        %v1287 = vpop.f32.mrb[0].mxu0
        %v1288 = vadd.f32 0.0, %v1287
        %v1289 = vpop.f32.mrb[0].mxu0
        %v1290 = vadd.f32 0.0, %v1289
        %v1291 = vpop.f32.mrb[0].mxu0
        %v1292 = vadd.f32 0.0, %v1291
        %1293 = vmatprep.mubr.bf16.mxu0 0
        %1294 = vmatmul.mubr.bf16.gmra.mrb[0].mxu0 %v1123
        %v1295 = vpop.f32.mrb[0].mxu0
        %v1296 = vadd.f32 0.0, %v1295
        %v1297 = vpop.f32.mrb[0].mxu0
        %v1298 = vadd.f32 0.0, %v1297
        %v1299 = vpop.f32.mrb[0].mxu0
        %v1300 = vadd.f32 0.0, %v1299
        %v1301 = vpop.f32.mrb[0].mxu0
        %v1302 = vadd.f32 0.0, %v1301
        %1303 = vmatprep.mubr.bf16.mxu0 0
        %1304 = vmatmul.mubr.bf16.gmra.mrb[0].mxu0 %v1124
        %v1305 = vpop.f32.mrb[0].mxu0
        %v1306 = vadd.f32 0.0, %v1305
        %v1307 = vpop.f32.mrb[0].mxu0
        %v1308 = vadd.f32 0.0, %v1307
        %v1309 = vpop.f32.mrb[0].mxu0
        %v1310 = vadd.f32 0.0, %v1309
        %v1311 = vpop.f32.mrb[0].mxu0
        %v1312 = vadd.f32 0.0, %v1311
        %1313 = vmatprep.mubr.bf16.mxu0 0
        %1314 = vmatmul.mubr.bf16.gmra.mrb[0].mxu0 %v1125
        %v1315 = vpop.f32.mrb[0].mxu0
        %v1316 = vadd.f32 0.0, %v1315
        %v1317 = vpop.f32.mrb[0].mxu0
        %v1318 = vadd.f32 0.0, %v1317
        %v1319 = vpop.f32.mrb[0].mxu0
        %v1320 = vadd.f32 0.0, %v1319
        %v1321 = vpop.f32.mrb[0].mxu0
        %v1322 = vadd.f32 0.0, %v1321
        %1323 = vmatprep.mubr.bf16.mxu0 0
        %1324 = vmatmul.mubr.bf16.gmra.mrb[0].mxu0 %v1126
        %v1325 = vpop.f32.mrb[0].mxu0
        %v1326 = vadd.f32 0.0, %v1325
        %v1327 = vpop.f32.mrb[0].mxu0
        %v1328 = vadd.f32 0.0, %v1327
        %v1329 = vpop.f32.mrb[0].mxu0
        %v1330 = vadd.f32 0.0, %v1329
        %v1331 = vpop.f32.mrb[0].mxu0
        %v1332 = vadd.f32 0.0, %v1331
        %1333 = vmatprep.mubr.bf16.mxu0 0
        %1334 = vmatmul.mubr.bf16.gmra.mrb[0].mxu0 %v1127
        %v1335 = vpop.f32.mrb[0].mxu0
        %v1336 = vadd.f32 0.0, %v1335
        %v1337 = vpop.f32.mrb[0].mxu0
        %v1338 = vadd.f32 0.0, %v1337
        %v1339 = vpop.f32.mrb[0].mxu0
        %v1340 = vadd.f32 0.0, %v1339
        %v1341 = vpop.f32.mrb[0].mxu0
        %v1342 = vadd.f32 0.0, %v1341
        %1343 = vmatprep.mubr.bf16.mxu0 0
        %1344 = vmatmul.mubr.bf16.gmra.mrb[0].mxu0 %v1128
        %v1345 = vpop.f32.mrb[0].mxu0
        %v1346 = vadd.f32 0.0, %v1345
        %v1347 = vpop.f32.mrb[0].mxu0
        %v1348 = vadd.f32 0.0, %v1347
        %v1349 = vpop.f32.mrb[0].mxu0
        %v1350 = vadd.f32 0.0, %v1349
        %v1351 = vpop.f32.mrb[0].mxu0
        %v1352 = vadd.f32 0.0, %v1351
        %1353 = vdwg.mxu0
        %v1354 = vmul.f32 %v1196, 0.088388346
        %v1355 = vmul.f32 %v1198, 0.088388346
        %v1356 = vmul.f32 %v1200, 0.088388346
        %v1357 = vmul.f32 %v1202, 0.088388346
        %v1358 = vmul.f32 %v1206, 0.088388346
        %v1359 = vmul.f32 %v1208, 0.088388346
        %v1360 = vmul.f32 %v1210, 0.088388346
        %v1361 = vmul.f32 %v1212, 0.088388346
        %v1362 = vmul.f32 %v1216, 0.088388346
        %v1363 = vmul.f32 %v1218, 0.088388346
        %v1364 = vmul.f32 %v1220, 0.088388346
        %v1365 = vmul.f32 %v1222, 0.088388346
        %v1366 = vmul.f32 %v1226, 0.088388346
        %v1367 = vmul.f32 %v1228, 0.088388346
        %v1368 = vmul.f32 %v1230, 0.088388346
        %v1369 = vmul.f32 %v1232, 0.088388346
        %v1370 = vmul.f32 %v1236, 0.088388346
        %v1371 = vmul.f32 %v1238, 0.088388346
        %v1372 = vmul.f32 %v1240, 0.088388346
        %v1373 = vmul.f32 %v1242, 0.088388346
        %v1374 = vmul.f32 %v1246, 0.088388346
        %v1375 = vmul.f32 %v1248, 0.088388346
        %v1376 = vmul.f32 %v1250, 0.088388346
        %v1377 = vmul.f32 %v1252, 0.088388346
        %v1378 = vmul.f32 %v1256, 0.088388346
        %v1379 = vmul.f32 %v1258, 0.088388346
        %v1380 = vmul.f32 %v1260, 0.088388346
        %v1381 = vmul.f32 %v1262, 0.088388346
        %v1382 = vmul.f32 %v1266, 0.088388346
        %v1383 = vmul.f32 %v1268, 0.088388346
        %v1384 = vmul.f32 %v1270, 0.088388346
        %v1385 = vmul.f32 %v1272, 0.088388346
        %v1386 = vmul.f32 %v1276, 0.088388346
        %v1387 = vmul.f32 %v1278, 0.088388346
        %v1388 = vmul.f32 %v1280, 0.088388346
        %v1389 = vmul.f32 %v1282, 0.088388346
        %v1390 = vmul.f32 %v1286, 0.088388346
        %v1391 = vmul.f32 %v1288, 0.088388346
        %v1392 = vmul.f32 %v1290, 0.088388346
        %v1393 = vmul.f32 %v1292, 0.088388346
        %v1394 = vmul.f32 %v1296, 0.088388346
        %v1395 = vmul.f32 %v1298, 0.088388346
        %v1396 = vmul.f32 %v1300, 0.088388346
        %v1397 = vmul.f32 %v1302, 0.088388346
        %v1398 = vmul.f32 %v1306, 0.088388346
        %v1399 = vmul.f32 %v1308, 0.088388346
        %v1400 = vmul.f32 %v1310, 0.088388346
        %v1401 = vmul.f32 %v1312, 0.088388346
        %v1402 = vmul.f32 %v1316, 0.088388346
        %v1403 = vmul.f32 %v1318, 0.088388346
        %v1404 = vmul.f32 %v1320, 0.088388346
        %v1405 = vmul.f32 %v1322, 0.088388346
        %v1406 = vmul.f32 %v1326, 0.088388346
        %v1407 = vmul.f32 %v1328, 0.088388346
        %v1408 = vmul.f32 %v1330, 0.088388346
        %v1409 = vmul.f32 %v1332, 0.088388346
        %v1410 = vmul.f32 %v1336, 0.088388346
        %v1411 = vmul.f32 %v1338, 0.088388346
        %v1412 = vmul.f32 %v1340, 0.088388346
        %v1413 = vmul.f32 %v1342, 0.088388346
        %v1414 = vmul.f32 %v1346, 0.088388346
        %v1415 = vmul.f32 %v1348, 0.088388346
        %v1416 = vmul.f32 %v1350, 0.088388346
        %v1417 = vmul.f32 %v1352, 0.088388346
        %v1418 = vld [vmem:[%s251] sm:$0xff]
        %v1419 = vld [vmem:[%s251 + $0x8] sm:$0xff]
        %v1420 = vld [vmem:[%s251 + $0x10] sm:$0xff]
        %v1421 = vld [vmem:[%s251 + $0x18] sm:$0xff]
        %v1422 = vld [vmem:[%s251 + $0x20] sm:$0xff]
        %v1423 = vld [vmem:[%s251 + $0x28] sm:$0xff]
        %v1424 = vld [vmem:[%s251 + $0x30] sm:$0xff]
        %v1425 = vld [vmem:[%s251 + $0x38] sm:$0xff]
        %v1426 = vld [vmem:[%s251 + $0x40] sm:$0xff]
        %v1427 = vld [vmem:[%s251 + $0x48] sm:$0xff]
        %v1428 = vld [vmem:[%s251 + $0x50] sm:$0xff]
        %v1429 = vld [vmem:[%s251 + $0x58] sm:$0xff]
        %v1430 = vld [vmem:[%s251 + $0x60] sm:$0xff]
        %v1431 = vld [vmem:[%s251 + $0x68] sm:$0xff]
        %v1432 = vld [vmem:[%s251 + $0x70] sm:$0xff]
        %v1433 = vld [vmem:[%s251 + $0x78] sm:$0xff]
        %v1434 = vld [vmem:[%s251 + $0x80] sm:$0xff]
        %v1435 = vld [vmem:[%s251 + $0x88] sm:$0xff]
        %v1436 = vld [vmem:[%s251 + $0x90] sm:$0xff]
        %v1437 = vld [vmem:[%s251 + $0x98] sm:$0xff]
        %v1438 = vld [vmem:[%s251 + $0xa0] sm:$0xff]
        %v1439 = vld [vmem:[%s251 + $0xa8] sm:$0xff]
        %v1440 = vld [vmem:[%s251 + $0xb0] sm:$0xff]
        %v1441 = vld [vmem:[%s251 + $0xb8] sm:$0xff]
        %v1442 = vld [vmem:[%s251 + $0xc0] sm:$0xff]
        %v1443 = vld [vmem:[%s251 + $0xc8] sm:$0xff]
        %v1444 = vld [vmem:[%s251 + $0xd0] sm:$0xff]
        %v1445 = vld [vmem:[%s251 + $0xd8] sm:$0xff]
        %v1446 = vld [vmem:[%s251 + $0xe0] sm:$0xff]
        %v1447 = vld [vmem:[%s251 + $0xe8] sm:$0xff]
        %v1448 = vld [vmem:[%s251 + $0xf0] sm:$0xff]
        %v1449 = vld [vmem:[%s251 + $0xf8] sm:$0xff]
        %v1450 = vld [vmem:[%s251 + $0x100] sm:$0xff]
        %v1451 = vld [vmem:[%s251 + $0x108] sm:$0xff]
        %v1452 = vld [vmem:[%s251 + $0x110] sm:$0xff]
        %v1453 = vld [vmem:[%s251 + $0x118] sm:$0xff]
        %v1454 = vld [vmem:[%s251 + $0x120] sm:$0xff]
        %v1455 = vld [vmem:[%s251 + $0x128] sm:$0xff]
        %v1456 = vld [vmem:[%s251 + $0x130] sm:$0xff]
        %v1457 = vld [vmem:[%s251 + $0x138] sm:$0xff]
        %v1458 = vld [vmem:[%s251 + $0x140] sm:$0xff]
        %v1459 = vld [vmem:[%s251 + $0x148] sm:$0xff]
        %v1460 = vld [vmem:[%s251 + $0x150] sm:$0xff]
        %v1461 = vld [vmem:[%s251 + $0x158] sm:$0xff]
        %v1462 = vld [vmem:[%s251 + $0x160] sm:$0xff]
        %v1463 = vld [vmem:[%s251 + $0x168] sm:$0xff]
        %v1464 = vld [vmem:[%s251 + $0x170] sm:$0xff]
        %v1465 = vld [vmem:[%s251 + $0x178] sm:$0xff]
        %v1466 = vld [vmem:[%s251 + $0x180] sm:$0xff]
        %v1467 = vld [vmem:[%s251 + $0x188] sm:$0xff]
        %v1468 = vld [vmem:[%s251 + $0x190] sm:$0xff]
        %v1469 = vld [vmem:[%s251 + $0x198] sm:$0xff]
        %v1470 = vld [vmem:[%s251 + $0x1a0] sm:$0xff]
        %v1471 = vld [vmem:[%s251 + $0x1a8] sm:$0xff]
        %v1472 = vld [vmem:[%s251 + $0x1b0] sm:$0xff]
        %v1473 = vld [vmem:[%s251 + $0x1b8] sm:$0xff]
        %v1474 = vld [vmem:[%s251 + $0x1c0] sm:$0xff]
        %v1475 = vld [vmem:[%s251 + $0x1c8] sm:$0xff]
        %v1476 = vld [vmem:[%s251 + $0x1d0] sm:$0xff]
        %v1477 = vld [vmem:[%s251 + $0x1d8] sm:$0xff]
        %v1478 = vld [vmem:[%s251 + $0x1e0] sm:$0xff]
        %v1479 = vld [vmem:[%s251 + $0x1e8] sm:$0xff]
        %v1480 = vld [vmem:[%s251 + $0x1f0] sm:$0xff]
        %v1481 = vld [vmem:[%s251 + $0x1f8] sm:$0xff]
        %v1482 = vadd.f32 %v1354, %v1418
        %v1483 = vadd.f32 %v1355, %v1419
        %v1484 = vadd.f32 %v1356, %v1420
        %v1485 = vadd.f32 %v1357, %v1421
        %v1486 = vadd.f32 %v1358, %v1422
        %v1487 = vadd.f32 %v1359, %v1423
        %v1488 = vadd.f32 %v1360, %v1424
        %v1489 = vadd.f32 %v1361, %v1425
        %v1490 = vadd.f32 %v1362, %v1426
        %v1491 = vadd.f32 %v1363, %v1427
        %v1492 = vadd.f32 %v1364, %v1428
        %v1493 = vadd.f32 %v1365, %v1429
        %v1494 = vadd.f32 %v1366, %v1430
        %v1495 = vadd.f32 %v1367, %v1431
        %v1496 = vadd.f32 %v1368, %v1432
        %v1497 = vadd.f32 %v1369, %v1433
        %v1498 = vadd.f32 %v1370, %v1434
        %v1499 = vadd.f32 %v1371, %v1435
        %v1500 = vadd.f32 %v1372, %v1436
        %v1501 = vadd.f32 %v1373, %v1437
        %v1502 = vadd.f32 %v1374, %v1438
        %v1503 = vadd.f32 %v1375, %v1439
        %v1504 = vadd.f32 %v1376, %v1440
        %v1505 = vadd.f32 %v1377, %v1441
        %v1506 = vadd.f32 %v1378, %v1442
        %v1507 = vadd.f32 %v1379, %v1443
        %v1508 = vadd.f32 %v1380, %v1444
        %v1509 = vadd.f32 %v1381, %v1445
        %v1510 = vadd.f32 %v1382, %v1446
        %v1511 = vadd.f32 %v1383, %v1447
        %v1512 = vadd.f32 %v1384, %v1448
        %v1513 = vadd.f32 %v1385, %v1449
        %v1514 = vadd.f32 %v1386, %v1450
        %v1515 = vadd.f32 %v1387, %v1451
        %v1516 = vadd.f32 %v1388, %v1452
        %v1517 = vadd.f32 %v1389, %v1453
        %v1518 = vadd.f32 %v1390, %v1454
        %v1519 = vadd.f32 %v1391, %v1455
        %v1520 = vadd.f32 %v1392, %v1456
        %v1521 = vadd.f32 %v1393, %v1457
        %v1522 = vadd.f32 %v1394, %v1458
        %v1523 = vadd.f32 %v1395, %v1459
        %v1524 = vadd.f32 %v1396, %v1460
        %v1525 = vadd.f32 %v1397, %v1461
        %v1526 = vadd.f32 %v1398, %v1462
        %v1527 = vadd.f32 %v1399, %v1463
        %v1528 = vadd.f32 %v1400, %v1464
        %v1529 = vadd.f32 %v1401, %v1465
        %v1530 = vadd.f32 %v1402, %v1466
        %v1531 = vadd.f32 %v1403, %v1467
        %v1532 = vadd.f32 %v1404, %v1468
        %v1533 = vadd.f32 %v1405, %v1469
        %v1534 = vadd.f32 %v1406, %v1470
        %v1535 = vadd.f32 %v1407, %v1471
        %v1536 = vadd.f32 %v1408, %v1472
        %v1537 = vadd.f32 %v1409, %v1473
        %v1538 = vadd.f32 %v1410, %v1474
        %v1539 = vadd.f32 %v1411, %v1475
        %v1540 = vadd.f32 %v1412, %v1476
        %v1541 = vadd.f32 %v1413, %v1477
        %v1542 = vadd.f32 %v1414, %v1478
        %v1543 = vadd.f32 %v1415, %v1479
        %v1544 = vadd.f32 %v1416, %v1480
        %v1545 = vadd.f32 %v1417, %v1481
        %v1546 = vmax.f32 %v1482, %v1483
        %1547 = vmax.xlane.f32.xlu0 %v1546
        %v1548 = vpop.xlane.xlu0 %1547
        %v1549 = vmax.f32 %v1484, %v1485
        %1550 = vmax.xlane.f32.xlu0 %v1549
        %v1551 = vpop.xlane.xlu0 %1550
        %v1552 = vmax.f32 %v1486, %v1487
        %1553 = vmax.xlane.f32.xlu0 %v1552
        %v1554 = vpop.xlane.xlu0 %1553
        %v1555 = vmax.f32 %v1488, %v1489
        %1556 = vmax.xlane.f32.xlu0 %v1555
        %v1557 = vpop.xlane.xlu0 %1556
        %v1558 = vmax.f32 %v1490, %v1491
        %1559 = vmax.xlane.f32.xlu0 %v1558
        %v1560 = vpop.xlane.xlu0 %1559
        %v1561 = vmax.f32 %v1492, %v1493
        %1562 = vmax.xlane.f32.xlu0 %v1561
        %v1563 = vpop.xlane.xlu0 %1562
        %v1564 = vmax.f32 %v1494, %v1495
        %1565 = vmax.xlane.f32.xlu0 %v1564
        %v1566 = vpop.xlane.xlu0 %1565
        %v1567 = vmax.f32 %v1496, %v1497
        %1568 = vmax.xlane.f32.xlu0 %v1567
        %v1569 = vpop.xlane.xlu0 %1568
        %v1570 = vmax.f32 %v1498, %v1499
        %1571 = vmax.xlane.f32.xlu0 %v1570
        %v1572 = vpop.xlane.xlu0 %1571
        %v1573 = vmax.f32 %v1500, %v1501
        %1574 = vmax.xlane.f32.xlu0 %v1573
        %v1575 = vpop.xlane.xlu0 %1574
        %v1576 = vmax.f32 %v1502, %v1503
        %1577 = vmax.xlane.f32.xlu0 %v1576
        %v1578 = vpop.xlane.xlu0 %1577
        %v1579 = vmax.f32 %v1504, %v1505
        %1580 = vmax.xlane.f32.xlu0 %v1579
        %v1581 = vpop.xlane.xlu0 %1580
        %v1582 = vmax.f32 %v1506, %v1507
        %1583 = vmax.xlane.f32.xlu0 %v1582
        %v1584 = vpop.xlane.xlu0 %1583
        %v1585 = vmax.f32 %v1508, %v1509
        %1586 = vmax.xlane.f32.xlu0 %v1585
        %v1587 = vpop.xlane.xlu0 %1586
        %v1588 = vmax.f32 %v1510, %v1511
        %1589 = vmax.xlane.f32.xlu0 %v1588
        %v1590 = vpop.xlane.xlu0 %1589
        %v1591 = vmax.f32 %v1512, %v1513
        %1592 = vmax.xlane.f32.xlu0 %v1591
        %v1593 = vpop.xlane.xlu0 %1592
        %v1594 = vmax.f32 %v1514, %v1515
        %1595 = vmax.xlane.f32.xlu0 %v1594
        %v1596 = vpop.xlane.xlu0 %1595
        %v1597 = vmax.f32 %v1516, %v1517
        %1598 = vmax.xlane.f32.xlu0 %v1597
        %v1599 = vpop.xlane.xlu0 %1598
        %v1600 = vmax.f32 %v1518, %v1519
        %1601 = vmax.xlane.f32.xlu0 %v1600
        %v1602 = vpop.xlane.xlu0 %1601
        %v1603 = vmax.f32 %v1520, %v1521
        %1604 = vmax.xlane.f32.xlu0 %v1603
        %v1605 = vpop.xlane.xlu0 %1604
        %v1606 = vmax.f32 %v1522, %v1523
        %1607 = vmax.xlane.f32.xlu0 %v1606
        %v1608 = vpop.xlane.xlu0 %1607
        %v1609 = vmax.f32 %v1524, %v1525
        %1610 = vmax.xlane.f32.xlu0 %v1609
        %v1611 = vpop.xlane.xlu0 %1610
        %v1612 = vmax.f32 %v1526, %v1527
        %1613 = vmax.xlane.f32.xlu0 %v1612
        %v1614 = vpop.xlane.xlu0 %1613
        %v1615 = vmax.f32 %v1528, %v1529
        %1616 = vmax.xlane.f32.xlu0 %v1615
        %v1617 = vpop.xlane.xlu0 %1616
        %v1618 = vmax.f32 %v1530, %v1531
        %1619 = vmax.xlane.f32.xlu0 %v1618
        %v1620 = vpop.xlane.xlu0 %1619
        %v1621 = vmax.f32 %v1532, %v1533
        %1622 = vmax.xlane.f32.xlu0 %v1621
        %v1623 = vpop.xlane.xlu0 %1622
        %v1624 = vmax.f32 %v1534, %v1535
        %1625 = vmax.xlane.f32.xlu0 %v1624
        %v1626 = vpop.xlane.xlu0 %1625
        %v1627 = vmax.f32 %v1536, %v1537
        %1628 = vmax.xlane.f32.xlu0 %v1627
        %v1629 = vpop.xlane.xlu0 %1628
        %v1630 = vmax.f32 %v1538, %v1539
        %1631 = vmax.xlane.f32.xlu0 %v1630
        %v1632 = vpop.xlane.xlu0 %1631
        %v1633 = vmax.f32 %v1540, %v1541
        %1634 = vmax.xlane.f32.xlu0 %v1633
        %v1635 = vpop.xlane.xlu0 %1634
        %v1636 = vmax.f32 %v1542, %v1543
        %1637 = vmax.xlane.f32.xlu0 %v1636
        %v1638 = vpop.xlane.xlu0 %1637
        %v1639 = vmax.f32 %v1544, %v1545
        %1640 = vmax.xlane.f32.xlu0 %v1639
        %v1641 = vpop.xlane.xlu0 %1640
        %v1642 = vsub.f32 %v1482, %v1548
        %v1643 = vsub.f32 %v1483, %v1548
        %v1644 = vsub.f32 %v1484, %v1551
        %v1645 = vsub.f32 %v1485, %v1551
        %v1646 = vsub.f32 %v1486, %v1554
        %v1647 = vsub.f32 %v1487, %v1554
        %v1648 = vsub.f32 %v1488, %v1557
        %v1649 = vsub.f32 %v1489, %v1557
        %v1650 = vsub.f32 %v1490, %v1560
        %v1651 = vsub.f32 %v1491, %v1560
        %v1652 = vsub.f32 %v1492, %v1563
        %v1653 = vsub.f32 %v1493, %v1563
        %v1654 = vsub.f32 %v1494, %v1566
        %v1655 = vsub.f32 %v1495, %v1566
        %v1656 = vsub.f32 %v1496, %v1569
        %v1657 = vsub.f32 %v1497, %v1569
        %v1658 = vsub.f32 %v1498, %v1572
        %v1659 = vsub.f32 %v1499, %v1572
        %v1660 = vsub.f32 %v1500, %v1575
        %v1661 = vsub.f32 %v1501, %v1575
        %v1662 = vsub.f32 %v1502, %v1578
        %v1663 = vsub.f32 %v1503, %v1578
        %v1664 = vsub.f32 %v1504, %v1581
        %v1665 = vsub.f32 %v1505, %v1581
        %v1666 = vsub.f32 %v1506, %v1584
        %v1667 = vsub.f32 %v1507, %v1584
        %v1668 = vsub.f32 %v1508, %v1587
        %v1669 = vsub.f32 %v1509, %v1587
        %v1670 = vsub.f32 %v1510, %v1590
        %v1671 = vsub.f32 %v1511, %v1590
        %v1672 = vsub.f32 %v1512, %v1593
        %v1673 = vsub.f32 %v1513, %v1593
        %v1674 = vsub.f32 %v1514, %v1596
        %v1675 = vsub.f32 %v1515, %v1596
        %v1676 = vsub.f32 %v1516, %v1599
        %v1677 = vsub.f32 %v1517, %v1599
        %v1678 = vsub.f32 %v1518, %v1602
        %v1679 = vsub.f32 %v1519, %v1602
        %v1680 = vsub.f32 %v1520, %v1605
        %v1681 = vsub.f32 %v1521, %v1605
        %v1682 = vsub.f32 %v1522, %v1608
        %v1683 = vsub.f32 %v1523, %v1608
        %v1684 = vsub.f32 %v1524, %v1611
        %v1685 = vsub.f32 %v1525, %v1611
        %v1686 = vsub.f32 %v1526, %v1614
        %v1687 = vsub.f32 %v1527, %v1614
        %v1688 = vsub.f32 %v1528, %v1617
        %v1689 = vsub.f32 %v1529, %v1617
        %v1690 = vsub.f32 %v1530, %v1620
        %v1691 = vsub.f32 %v1531, %v1620
        %v1692 = vsub.f32 %v1532, %v1623
        %v1693 = vsub.f32 %v1533, %v1623
        %v1694 = vsub.f32 %v1534, %v1626
        %v1695 = vsub.f32 %v1535, %v1626
        %v1696 = vsub.f32 %v1536, %v1629
        %v1697 = vsub.f32 %v1537, %v1629
        %v1698 = vsub.f32 %v1538, %v1632
        %v1699 = vsub.f32 %v1539, %v1632
        %v1700 = vsub.f32 %v1540, %v1635
        %v1701 = vsub.f32 %v1541, %v1635
        %v1702 = vsub.f32 %v1542, %v1638
        %v1703 = vsub.f32 %v1543, %v1638
        %v1704 = vsub.f32 %v1544, %v1641
        %v1705 = vsub.f32 %v1545, %v1641
        %v1706 = vmul.f32 %v1642, 1.442695
        %v1707 = vpow.pop %v1706
        %v1708 = vmul.f32 %v1643, 1.442695
        %v1709 = vpow.pop %v1708
        %v1710 = vmul.f32 %v1644, 1.442695
        %v1711 = vpow.pop %v1710
        %v1712 = vmul.f32 %v1645, 1.442695
        %v1713 = vpow.pop %v1712
        %v1714 = vmul.f32 %v1646, 1.442695
        %v1715 = vpow.pop %v1714
        %v1716 = vmul.f32 %v1647, 1.442695
        %v1717 = vpow.pop %v1716
        %v1718 = vmul.f32 %v1648, 1.442695
        %v1719 = vpow.pop %v1718
        %v1720 = vmul.f32 %v1649, 1.442695
        %v1721 = vpow.pop %v1720
        %v1722 = vmul.f32 %v1650, 1.442695
        %v1723 = vpow.pop %v1722
        %v1724 = vmul.f32 %v1651, 1.442695
        %v1725 = vpow.pop %v1724
        %v1726 = vmul.f32 %v1652, 1.442695
        %v1727 = vpow.pop %v1726
        %v1728 = vmul.f32 %v1653, 1.442695
        %v1729 = vpow.pop %v1728
        %v1730 = vmul.f32 %v1654, 1.442695
        %v1731 = vpow.pop %v1730
        %v1732 = vmul.f32 %v1655, 1.442695
        %v1733 = vpow.pop %v1732
        %v1734 = vmul.f32 %v1656, 1.442695
        %v1735 = vpow.pop %v1734
        %v1736 = vmul.f32 %v1657, 1.442695
        %v1737 = vpow.pop %v1736
        %v1738 = vmul.f32 %v1658, 1.442695
        %v1739 = vpow.pop %v1738
        %v1740 = vmul.f32 %v1659, 1.442695
        %v1741 = vpow.pop %v1740
        %v1742 = vmul.f32 %v1660, 1.442695
        %v1743 = vpow.pop %v1742
        %v1744 = vmul.f32 %v1661, 1.442695
        %v1745 = vpow.pop %v1744
        %v1746 = vmul.f32 %v1662, 1.442695
        %v1747 = vpow.pop %v1746
        %v1748 = vmul.f32 %v1663, 1.442695
        %v1749 = vpow.pop %v1748
        %v1750 = vmul.f32 %v1664, 1.442695
        %v1751 = vpow.pop %v1750
        %v1752 = vmul.f32 %v1665, 1.442695
        %v1753 = vpow.pop %v1752
        %v1754 = vmul.f32 %v1666, 1.442695
        %v1755 = vpow.pop %v1754
        %v1756 = vmul.f32 %v1667, 1.442695
        %v1757 = vpow.pop %v1756
        %v1758 = vmul.f32 %v1668, 1.442695
        %v1759 = vpow.pop %v1758
        %v1760 = vmul.f32 %v1669, 1.442695
        %v1761 = vpow.pop %v1760
        %v1762 = vmul.f32 %v1670, 1.442695
        %v1763 = vpow.pop %v1762
        %v1764 = vmul.f32 %v1671, 1.442695
        %v1765 = vpow.pop %v1764
        %v1766 = vmul.f32 %v1672, 1.442695
        %v1767 = vpow.pop %v1766
        %v1768 = vmul.f32 %v1673, 1.442695
        %v1769 = vpow.pop %v1768
        %v1770 = vmul.f32 %v1674, 1.442695
        %v1771 = vpow.pop %v1770
        %v1772 = vmul.f32 %v1675, 1.442695
        %v1773 = vpow.pop %v1772
        %v1774 = vmul.f32 %v1676, 1.442695
        %v1775 = vpow.pop %v1774
        %v1776 = vmul.f32 %v1677, 1.442695
        %v1777 = vpow.pop %v1776
        %v1778 = vmul.f32 %v1678, 1.442695
        %v1779 = vpow.pop %v1778
        %v1780 = vmul.f32 %v1679, 1.442695
        %v1781 = vpow.pop %v1780
        %v1782 = vmul.f32 %v1680, 1.442695
        %v1783 = vpow.pop %v1782
        %v1784 = vmul.f32 %v1681, 1.442695
        %v1785 = vpow.pop %v1784
        %v1786 = vmul.f32 %v1682, 1.442695
        %v1787 = vpow.pop %v1786
        %v1788 = vmul.f32 %v1683, 1.442695
        %v1789 = vpow.pop %v1788
        %v1790 = vmul.f32 %v1684, 1.442695
        %v1791 = vpow.pop %v1790
        %v1792 = vmul.f32 %v1685, 1.442695
        %v1793 = vpow.pop %v1792
        %v1794 = vmul.f32 %v1686, 1.442695
        %v1795 = vpow.pop %v1794
        %v1796 = vmul.f32 %v1687, 1.442695
        %v1797 = vpow.pop %v1796
        %v1798 = vmul.f32 %v1688, 1.442695
        %v1799 = vpow.pop %v1798
        %v1800 = vmul.f32 %v1689, 1.442695
        %v1801 = vpow.pop %v1800
        %v1802 = vmul.f32 %v1690, 1.442695
        %v1803 = vpow.pop %v1802
        %v1804 = vmul.f32 %v1691, 1.442695
        %v1805 = vpow.pop %v1804
        %v1806 = vmul.f32 %v1692, 1.442695
        %v1807 = vpow.pop %v1806
        %v1808 = vmul.f32 %v1693, 1.442695
        %v1809 = vpow.pop %v1808
        %v1810 = vmul.f32 %v1694, 1.442695
        %v1811 = vpow.pop %v1810
        %v1812 = vmul.f32 %v1695, 1.442695
        %v1813 = vpow.pop %v1812
        %v1814 = vmul.f32 %v1696, 1.442695
        %v1815 = vpow.pop %v1814
        %v1816 = vmul.f32 %v1697, 1.442695
        %v1817 = vpow.pop %v1816
        %v1818 = vmul.f32 %v1698, 1.442695
        %v1819 = vpow.pop %v1818
        %v1820 = vmul.f32 %v1699, 1.442695
        %v1821 = vpow.pop %v1820
        %v1822 = vmul.f32 %v1700, 1.442695
        %v1823 = vpow.pop %v1822
        %v1824 = vmul.f32 %v1701, 1.442695
        %v1825 = vpow.pop %v1824
        %v1826 = vmul.f32 %v1702, 1.442695
        %v1827 = vpow.pop %v1826
        %v1828 = vmul.f32 %v1703, 1.442695
        %v1829 = vpow.pop %v1828
        %v1830 = vmul.f32 %v1704, 1.442695
        %v1831 = vpow.pop %v1830
        %v1832 = vmul.f32 %v1705, 1.442695
        %v1833 = vpow.pop %v1832
        %v1834 = vadd.f32 %v1707, %v1709
        %1835 = vadd.xlane.f32.xlu0 %v1834
        %v1836 = vpop.xlane.xlu0 %1835
        %v1837 = vadd.f32 %v1711, %v1713
        %1838 = vadd.xlane.f32.xlu0 %v1837
        %v1839 = vpop.xlane.xlu0 %1838
        %v1840 = vadd.f32 %v1715, %v1717
        %1841 = vadd.xlane.f32.xlu0 %v1840
        %v1842 = vpop.xlane.xlu0 %1841
        %v1843 = vadd.f32 %v1719, %v1721
        %1844 = vadd.xlane.f32.xlu0 %v1843
        %v1845 = vpop.xlane.xlu0 %1844
        %v1846 = vadd.f32 %v1723, %v1725
        %1847 = vadd.xlane.f32.xlu0 %v1846
        %v1848 = vpop.xlane.xlu0 %1847
        %v1849 = vadd.f32 %v1727, %v1729
        %1850 = vadd.xlane.f32.xlu0 %v1849
        %v1851 = vpop.xlane.xlu0 %1850
        %v1852 = vadd.f32 %v1731, %v1733
        %1853 = vadd.xlane.f32.xlu0 %v1852
        %v1854 = vpop.xlane.xlu0 %1853
        %v1855 = vadd.f32 %v1735, %v1737
        %1856 = vadd.xlane.f32.xlu0 %v1855
        %v1857 = vpop.xlane.xlu0 %1856
        %v1858 = vadd.f32 %v1739, %v1741
        %1859 = vadd.xlane.f32.xlu0 %v1858
        %v1860 = vpop.xlane.xlu0 %1859
        %v1861 = vadd.f32 %v1743, %v1745
        %1862 = vadd.xlane.f32.xlu0 %v1861
        %v1863 = vpop.xlane.xlu0 %1862
        %v1864 = vadd.f32 %v1747, %v1749
        %1865 = vadd.xlane.f32.xlu0 %v1864
        %v1866 = vpop.xlane.xlu0 %1865
        %v1867 = vadd.f32 %v1751, %v1753
        %1868 = vadd.xlane.f32.xlu0 %v1867
        %v1869 = vpop.xlane.xlu0 %1868
        %v1870 = vadd.f32 %v1755, %v1757
        %1871 = vadd.xlane.f32.xlu0 %v1870
        %v1872 = vpop.xlane.xlu0 %1871
        %v1873 = vadd.f32 %v1759, %v1761
        %1874 = vadd.xlane.f32.xlu0 %v1873
        %v1875 = vpop.xlane.xlu0 %1874
        %v1876 = vadd.f32 %v1763, %v1765
        %1877 = vadd.xlane.f32.xlu0 %v1876
        %v1878 = vpop.xlane.xlu0 %1877
        %v1879 = vadd.f32 %v1767, %v1769
        %1880 = vadd.xlane.f32.xlu0 %v1879
        %v1881 = vpop.xlane.xlu0 %1880
        %v1882 = vadd.f32 %v1771, %v1773
        %1883 = vadd.xlane.f32.xlu0 %v1882
        %v1884 = vpop.xlane.xlu0 %1883
        %v1885 = vadd.f32 %v1775, %v1777
        %1886 = vadd.xlane.f32.xlu0 %v1885
        %v1887 = vpop.xlane.xlu0 %1886
        %v1888 = vadd.f32 %v1779, %v1781
        %1889 = vadd.xlane.f32.xlu0 %v1888
        %v1890 = vpop.xlane.xlu0 %1889
        %v1891 = vadd.f32 %v1783, %v1785
        %1892 = vadd.xlane.f32.xlu0 %v1891
        %v1893 = vpop.xlane.xlu0 %1892
        %v1894 = vadd.f32 %v1787, %v1789
        %1895 = vadd.xlane.f32.xlu0 %v1894
        %v1896 = vpop.xlane.xlu0 %1895
        %v1897 = vadd.f32 %v1791, %v1793
        %1898 = vadd.xlane.f32.xlu0 %v1897
        %v1899 = vpop.xlane.xlu0 %1898
        %v1900 = vadd.f32 %v1795, %v1797
        %1901 = vadd.xlane.f32.xlu0 %v1900
        %v1902 = vpop.xlane.xlu0 %1901
        %v1903 = vadd.f32 %v1799, %v1801
        %1904 = vadd.xlane.f32.xlu0 %v1903
        %v1905 = vpop.xlane.xlu0 %1904
        %v1906 = vadd.f32 %v1803, %v1805
        %1907 = vadd.xlane.f32.xlu0 %v1906
        %v1908 = vpop.xlane.xlu0 %1907
        %v1909 = vadd.f32 %v1807, %v1809
        %1910 = vadd.xlane.f32.xlu0 %v1909
        %v1911 = vpop.xlane.xlu0 %1910
        %v1912 = vadd.f32 %v1811, %v1813
        %1913 = vadd.xlane.f32.xlu0 %v1912
        %v1914 = vpop.xlane.xlu0 %1913
        %v1915 = vadd.f32 %v1815, %v1817
        %1916 = vadd.xlane.f32.xlu0 %v1915
        %v1917 = vpop.xlane.xlu0 %1916
        %v1918 = vadd.f32 %v1819, %v1821
        %1919 = vadd.xlane.f32.xlu0 %v1918
        %v1920 = vpop.xlane.xlu0 %1919
        %v1921 = vadd.f32 %v1823, %v1825
        %1922 = vadd.xlane.f32.xlu0 %v1921
        %v1923 = vpop.xlane.xlu0 %1922
        %v1924 = vadd.f32 %v1827, %v1829
        %1925 = vadd.xlane.f32.xlu0 %v1924
        %v1926 = vpop.xlane.xlu0 %1925
        %v1927 = vadd.f32 %v1831, %v1833
        %1928 = vadd.xlane.f32.xlu0 %v1927
        %v1929 = vpop.xlane.xlu0 %1928
        %v1930 = vrcp.pop %v1836
        %v1931 = vrcp.pop %v1839
        %v1932 = vrcp.pop %v1842
        %v1933 = vrcp.pop %v1845
        %v1934 = vrcp.pop %v1848
        %v1935 = vrcp.pop %v1851
        %v1936 = vrcp.pop %v1854
        %v1937 = vrcp.pop %v1857
        %v1938 = vrcp.pop %v1860
        %v1939 = vrcp.pop %v1863
        %v1940 = vrcp.pop %v1866
        %v1941 = vrcp.pop %v1869
        %v1942 = vrcp.pop %v1872
        %v1943 = vrcp.pop %v1875
        %v1944 = vrcp.pop %v1878
        %v1945 = vrcp.pop %v1881
        %v1946 = vrcp.pop %v1884
        %v1947 = vrcp.pop %v1887
        %v1948 = vrcp.pop %v1890
        %v1949 = vrcp.pop %v1893
        %v1950 = vrcp.pop %v1896
        %v1951 = vrcp.pop %v1899
        %v1952 = vrcp.pop %v1902
        %v1953 = vrcp.pop %v1905
        %v1954 = vrcp.pop %v1908
        %v1955 = vrcp.pop %v1911
        %v1956 = vrcp.pop %v1914
        %v1957 = vrcp.pop %v1917
        %v1958 = vrcp.pop %v1920
        %v1959 = vrcp.pop %v1923
        %v1960 = vrcp.pop %v1926
        %v1961 = vrcp.pop %v1929
        %v1962 = vmul.f32 %v1707, %v1930
        %v1963 = vmul.f32 %v1709, %v1930
        %v1964 = vmul.f32 %v1711, %v1931
        %v1965 = vmul.f32 %v1713, %v1931
        %v1966 = vmul.f32 %v1715, %v1932
        %v1967 = vmul.f32 %v1717, %v1932
        %v1968 = vmul.f32 %v1719, %v1933
        %v1969 = vmul.f32 %v1721, %v1933
        %v1970 = vmul.f32 %v1723, %v1934
        %v1971 = vmul.f32 %v1725, %v1934
        %v1972 = vmul.f32 %v1727, %v1935
        %v1973 = vmul.f32 %v1729, %v1935
        %v1974 = vmul.f32 %v1731, %v1936
        %v1975 = vmul.f32 %v1733, %v1936
        %v1976 = vmul.f32 %v1735, %v1937
        %v1977 = vmul.f32 %v1737, %v1937
        %v1978 = vmul.f32 %v1739, %v1938
        %v1979 = vmul.f32 %v1741, %v1938
        %v1980 = vmul.f32 %v1743, %v1939
        %v1981 = vmul.f32 %v1745, %v1939
        %v1982 = vmul.f32 %v1747, %v1940
        %v1983 = vmul.f32 %v1749, %v1940
        %v1984 = vmul.f32 %v1751, %v1941
        %v1985 = vmul.f32 %v1753, %v1941
        %v1986 = vmul.f32 %v1755, %v1942
        %v1987 = vmul.f32 %v1757, %v1942
        %v1988 = vmul.f32 %v1759, %v1943
        %v1989 = vmul.f32 %v1761, %v1943
        %v1990 = vmul.f32 %v1763, %v1944
        %v1991 = vmul.f32 %v1765, %v1944
        %v1992 = vmul.f32 %v1767, %v1945
        %v1993 = vmul.f32 %v1769, %v1945
        %v1994 = vmul.f32 %v1771, %v1946
        %v1995 = vmul.f32 %v1773, %v1946
        %v1996 = vmul.f32 %v1775, %v1947
        %v1997 = vmul.f32 %v1777, %v1947
        %v1998 = vmul.f32 %v1779, %v1948
        %v1999 = vmul.f32 %v1781, %v1948
        %v2000 = vmul.f32 %v1783, %v1949
        %v2001 = vmul.f32 %v1785, %v1949
        %v2002 = vmul.f32 %v1787, %v1950
        %v2003 = vmul.f32 %v1789, %v1950
        %v2004 = vmul.f32 %v1791, %v1951
        %v2005 = vmul.f32 %v1793, %v1951
        %v2006 = vmul.f32 %v1795, %v1952
        %v2007 = vmul.f32 %v1797, %v1952
        %v2008 = vmul.f32 %v1799, %v1953
        %v2009 = vmul.f32 %v1801, %v1953
        %v2010 = vmul.f32 %v1803, %v1954
        %v2011 = vmul.f32 %v1805, %v1954
        %v2012 = vmul.f32 %v1807, %v1955
        %v2013 = vmul.f32 %v1809, %v1955
        %v2014 = vmul.f32 %v1811, %v1956
        %v2015 = vmul.f32 %v1813, %v1956
        %v2016 = vmul.f32 %v1815, %v1957
        %v2017 = vmul.f32 %v1817, %v1957
        %v2018 = vmul.f32 %v1819, %v1958
        %v2019 = vmul.f32 %v1821, %v1958
        %v2020 = vmul.f32 %v1823, %v1959
        %v2021 = vmul.f32 %v1825, %v1959
        %v2022 = vmul.f32 %v1827, %v1960
        %v2023 = vmul.f32 %v1829, %v1960
        %v2024 = vmul.f32 %v1831, %v1961
        %v2025 = vmul.f32 %v1833, %v1961
        %v2026 = vpack.c.bf16 %v1964, %v1962
        %v2027 = vpack.c.bf16 %v1965, %v1963
        %v2028 = vpack.c.bf16 %v1968, %v1966
        %v2029 = vpack.c.bf16 %v1969, %v1967
        %v2030 = vpack.c.bf16 %v1972, %v1970
        %v2031 = vpack.c.bf16 %v1973, %v1971
        %v2032 = vpack.c.bf16 %v1976, %v1974
        %v2033 = vpack.c.bf16 %v1977, %v1975
        %v2034 = vpack.c.bf16 %v1980, %v1978
        %v2035 = vpack.c.bf16 %v1981, %v1979
        %v2036 = vpack.c.bf16 %v1984, %v1982
        %v2037 = vpack.c.bf16 %v1985, %v1983
        %v2038 = vpack.c.bf16 %v1988, %v1986
        %v2039 = vpack.c.bf16 %v1989, %v1987
        %v2040 = vpack.c.bf16 %v1992, %v1990
        %v2041 = vpack.c.bf16 %v1993, %v1991
        %v2042 = vpack.c.bf16 %v1996, %v1994
        %v2043 = vpack.c.bf16 %v1997, %v1995
        %v2044 = vpack.c.bf16 %v2000, %v1998
        %v2045 = vpack.c.bf16 %v2001, %v1999
        %v2046 = vpack.c.bf16 %v2004, %v2002
        %v2047 = vpack.c.bf16 %v2005, %v2003
        %v2048 = vpack.c.bf16 %v2008, %v2006
        %v2049 = vpack.c.bf16 %v2009, %v2007
        %v2050 = vpack.c.bf16 %v2012, %v2010
        %v2051 = vpack.c.bf16 %v2013, %v2011
        %v2052 = vpack.c.bf16 %v2016, %v2014
        %v2053 = vpack.c.bf16 %v2017, %v2015
        %v2054 = vpack.c.bf16 %v2020, %v2018
        %v2055 = vpack.c.bf16 %v2021, %v2019
        %v2056 = vpack.c.bf16 %v2024, %v2022
        %v2057 = vpack.c.bf16 %v2025, %v2023
        %2058 = vmatprep.subr.bf16.mxu0 0
        %2059 = vmatpush1.bf16.msra.mxu0 %v1145
        %2060 = vmatprep.subr.bf16.mxu0 0
        %2061 = vmatpush1.bf16.msra.mxu0 %v1146
        %2062 = vmatprep.subr.bf16.mxu0 0
        %2063 = vmatpush1.bf16.msra.mxu0 %v1147
        %2064 = vmatprep.subr.bf16.mxu0 0
        %2065 = vmatpush1.bf16.msra.mxu0 %v1148
        %2066 = vmatprep.subr.bf16.mxu0 0
        %2067 = vmatpush1.bf16.msra.mxu0 %v1149
        %2068 = vmatprep.subr.bf16.mxu0 0
        %2069 = vmatpush1.bf16.msra.mxu0 %v1150
        %2070 = vmatprep.subr.bf16.mxu0 0
        %2071 = vmatpush1.bf16.msra.mxu0 %v1151
        %2072 = vmatprep.subr.bf16.mxu0 0
        %2073 = vmatpush1.bf16.msra.mxu0 %v1152
        %2074 = vmatprep.subr.bf16.mxu0 0
        %2075 = vmatpush1.bf16.msra.mxu0 %v1153
        %2076 = vmatprep.subr.bf16.mxu0 0
        %2077 = vmatpush1.bf16.msra.mxu0 %v1154
        %2078 = vmatprep.subr.bf16.mxu0 0
        %2079 = vmatpush1.bf16.msra.mxu0 %v1155
        %2080 = vmatprep.subr.bf16.mxu0 0
        %2081 = vmatpush1.bf16.msra.mxu0 %v1156
        %2082 = vmatprep.subr.bf16.mxu0 0
        %2083 = vmatpush1.bf16.msra.mxu0 %v1157
        %2084 = vmatprep.subr.bf16.mxu0 0
        %2085 = vmatpush1.bf16.msra.mxu0 %v1158
        %2086 = vmatprep.subr.bf16.mxu0 0
        %2087 = vmatpush1.bf16.msra.mxu0 %v1159
        %2088 = vmatprep.subr.bf16.mxu0 0
        %2089 = vmatpush1.bf16.msra.mxu0 %v1160
        %2090 = vmatprep.mubr.bf16.mxu0 %v2027
        %2091 = vmatmul.mubr.bf16.gmra.mrb[0].mxu0 %v2026
        %v2092 = vpop.f32.mrb[0].mxu0
        %v2093 = vadd.f32 0.0, %v2092
        %v2094 = vpop.f32.mrb[0].mxu0
        %v2095 = vpop.f32.mrb[0].mxu0
        %v2096 = vadd.f32 0.0, %v2095
        %v2097 = vpop.f32.mrb[0].mxu0
        %2098 = vmatprep.mubr.bf16.mxu0 %v2029
        %2099 = vmatmul.mubr.bf16.gmra.mrb[0].mxu0 %v2028
        %v2100 = vpop.f32.mrb[0].mxu0
        %v2101 = vadd.f32 0.0, %v2100
        %v2102 = vpop.f32.mrb[0].mxu0
        %v2103 = vpop.f32.mrb[0].mxu0
        %v2104 = vadd.f32 0.0, %v2103
        %v2105 = vpop.f32.mrb[0].mxu0
        %2106 = vmatprep.mubr.bf16.mxu0 %v2031
        %2107 = vmatmul.mubr.bf16.gmra.mrb[0].mxu0 %v2030
        %v2108 = vpop.f32.mrb[0].mxu0
        %v2109 = vadd.f32 0.0, %v2108
        %v2110 = vpop.f32.mrb[0].mxu0
        %v2111 = vpop.f32.mrb[0].mxu0
        %v2112 = vadd.f32 0.0, %v2111
        %v2113 = vpop.f32.mrb[0].mxu0
        %2114 = vmatprep.mubr.bf16.mxu0 %v2033
        %2115 = vmatmul.mubr.bf16.gmra.mrb[0].mxu0 %v2032
        %v2116 = vpop.f32.mrb[0].mxu0
        %v2117 = vadd.f32 0.0, %v2116
        %v2118 = vpop.f32.mrb[0].mxu0
        %v2119 = vpop.f32.mrb[0].mxu0
        %v2120 = vadd.f32 0.0, %v2119
        %v2121 = vpop.f32.mrb[0].mxu0
        %2122 = vmatprep.mubr.bf16.mxu0 %v2035
        %2123 = vmatmul.mubr.bf16.gmra.mrb[0].mxu0 %v2034
        %v2124 = vpop.f32.mrb[0].mxu0
        %v2125 = vadd.f32 0.0, %v2124
        %v2126 = vpop.f32.mrb[0].mxu0
        %v2127 = vpop.f32.mrb[0].mxu0
        %v2128 = vadd.f32 0.0, %v2127
        %v2129 = vpop.f32.mrb[0].mxu0
        %2130 = vmatprep.mubr.bf16.mxu0 %v2037
        %2131 = vmatmul.mubr.bf16.gmra.mrb[0].mxu0 %v2036
        %v2132 = vpop.f32.mrb[0].mxu0
        %v2133 = vadd.f32 0.0, %v2132
        %v2134 = vpop.f32.mrb[0].mxu0
        %v2135 = vpop.f32.mrb[0].mxu0
        %v2136 = vadd.f32 0.0, %v2135
        %v2137 = vpop.f32.mrb[0].mxu0
        %2138 = vmatprep.mubr.bf16.mxu0 %v2039
        %2139 = vmatmul.mubr.bf16.gmra.mrb[0].mxu0 %v2038
        %v2140 = vpop.f32.mrb[0].mxu0
        %v2141 = vadd.f32 0.0, %v2140
        %v2142 = vpop.f32.mrb[0].mxu0
        %v2143 = vpop.f32.mrb[0].mxu0
        %v2144 = vadd.f32 0.0, %v2143
        %v2145 = vpop.f32.mrb[0].mxu0
        %2146 = vmatprep.mubr.bf16.mxu0 %v2041
        %2147 = vmatmul.mubr.bf16.gmra.mrb[0].mxu0 %v2040
        %v2148 = vpop.f32.mrb[0].mxu0
        %v2149 = vadd.f32 0.0, %v2148
        %v2150 = vpop.f32.mrb[0].mxu0
        %v2151 = vpop.f32.mrb[0].mxu0
        %v2152 = vadd.f32 0.0, %v2151
        %v2153 = vpop.f32.mrb[0].mxu0
        %2154 = vmatprep.mubr.bf16.mxu0 %v2043
        %2155 = vmatmul.mubr.bf16.gmra.mrb[0].mxu0 %v2042
        %v2156 = vpop.f32.mrb[0].mxu0
        %v2157 = vadd.f32 0.0, %v2156
        %v2158 = vpop.f32.mrb[0].mxu0
        %v2159 = vpop.f32.mrb[0].mxu0
        %v2160 = vadd.f32 0.0, %v2159
        %v2161 = vpop.f32.mrb[0].mxu0
        %2162 = vmatprep.mubr.bf16.mxu0 %v2045
        %2163 = vmatmul.mubr.bf16.gmra.mrb[0].mxu0 %v2044
        %v2164 = vpop.f32.mrb[0].mxu0
        %v2165 = vadd.f32 0.0, %v2164
        %v2166 = vpop.f32.mrb[0].mxu0
        %v2167 = vpop.f32.mrb[0].mxu0
        %v2168 = vadd.f32 0.0, %v2167
        %v2169 = vpop.f32.mrb[0].mxu0
        %2170 = vmatprep.mubr.bf16.mxu0 %v2047
        %2171 = vmatmul.mubr.bf16.gmra.mrb[0].mxu0 %v2046
        %v2172 = vpop.f32.mrb[0].mxu0
        %v2173 = vadd.f32 0.0, %v2172
        %v2174 = vpop.f32.mrb[0].mxu0
        %v2175 = vpop.f32.mrb[0].mxu0
        %v2176 = vadd.f32 0.0, %v2175
        %v2177 = vpop.f32.mrb[0].mxu0
        %2178 = vmatprep.mubr.bf16.mxu0 %v2049
        %2179 = vmatmul.mubr.bf16.gmra.mrb[0].mxu0 %v2048
        %v2180 = vpop.f32.mrb[0].mxu0
        %v2181 = vadd.f32 0.0, %v2180
        %v2182 = vpop.f32.mrb[0].mxu0
        %v2183 = vpop.f32.mrb[0].mxu0
        %v2184 = vadd.f32 0.0, %v2183
        %v2185 = vpop.f32.mrb[0].mxu0
        %2186 = vmatprep.mubr.bf16.mxu0 %v2051
        %2187 = vmatmul.mubr.bf16.gmra.mrb[0].mxu0 %v2050
        %v2188 = vpop.f32.mrb[0].mxu0
        %v2189 = vadd.f32 0.0, %v2188
        %v2190 = vpop.f32.mrb[0].mxu0
        %v2191 = vpop.f32.mrb[0].mxu0
        %v2192 = vadd.f32 0.0, %v2191
        %v2193 = vpop.f32.mrb[0].mxu0
        %2194 = vmatprep.mubr.bf16.mxu0 %v2053
        %2195 = vmatmul.mubr.bf16.gmra.mrb[0].mxu0 %v2052
        %v2196 = vpop.f32.mrb[0].mxu0
        %v2197 = vadd.f32 0.0, %v2196
        %v2198 = vpop.f32.mrb[0].mxu0
        %v2199 = vpop.f32.mrb[0].mxu0
        %v2200 = vadd.f32 0.0, %v2199
        %v2201 = vpop.f32.mrb[0].mxu0
        %2202 = vmatprep.mubr.bf16.mxu0 %v2055
        %2203 = vmatmul.mubr.bf16.gmra.mrb[0].mxu0 %v2054
        %v2204 = vpop.f32.mrb[0].mxu0
        %v2205 = vadd.f32 0.0, %v2204
        %v2206 = vpop.f32.mrb[0].mxu0
        %v2207 = vpop.f32.mrb[0].mxu0
        %v2208 = vadd.f32 0.0, %v2207
        %v2209 = vpop.f32.mrb[0].mxu0
        %2210 = vmatprep.mubr.bf16.mxu0 %v2057
        %2211 = vmatmul.mubr.bf16.gmra.mrb[0].mxu0 %v2056
        %v2212 = vpop.f32.mrb[0].mxu0
        %v2213 = vadd.f32 0.0, %v2212
        %v2214 = vpop.f32.mrb[0].mxu0
        %v2215 = vpop.f32.mrb[0].mxu0
        %v2216 = vadd.f32 0.0, %v2215
        %v2217 = vpop.f32.mrb[0].mxu0
        %2218 = vdwg.mxu0
        %v2219 = vrot.slane %v2093, 4
        %v2220 = vadd.f32 %v2093, %v2219
        %v2221 = vrot.slane %v2220, 2
        %v2222 = vadd.f32 %v2220, %v2221
        %v2223 = vrot.slane %v2222, 1
        %v2224 = vadd.f32 %v2222, %v2223
        %v2225 = vrot.slane %v2096, 4
        %v2226 = vadd.f32 %v2096, %v2225
        %v2227 = vrot.slane %v2226, 2
        %v2228 = vadd.f32 %v2226, %v2227
        %v2229 = vrot.slane %v2228, 1
        %v2230 = vadd.f32 %v2228, %v2229
        %v2231 = vrot.slane %v2101, 4
        %v2232 = vadd.f32 %v2101, %v2231
        %v2233 = vrot.slane %v2232, 2
        %v2234 = vadd.f32 %v2232, %v2233
        %v2235 = vrot.slane %v2234, 1
        %v2236 = vadd.f32 %v2234, %v2235
        %v2237 = vrot.slane %v2104, 4
        %v2238 = vadd.f32 %v2104, %v2237
        %v2239 = vrot.slane %v2238, 2
        %v2240 = vadd.f32 %v2238, %v2239
        %v2241 = vrot.slane %v2240, 1
        %v2242 = vadd.f32 %v2240, %v2241
        %v2243 = vrot.slane %v2109, 4
        %v2244 = vadd.f32 %v2109, %v2243
        %v2245 = vrot.slane %v2244, 2
        %v2246 = vadd.f32 %v2244, %v2245
        %v2247 = vrot.slane %v2246, 1
        %v2248 = vadd.f32 %v2246, %v2247
        %v2249 = vrot.slane %v2112, 4
        %v2250 = vadd.f32 %v2112, %v2249
        %v2251 = vrot.slane %v2250, 2
        %v2252 = vadd.f32 %v2250, %v2251
        %v2253 = vrot.slane %v2252, 1
        %v2254 = vadd.f32 %v2252, %v2253
        %v2255 = vrot.slane %v2117, 4
        %v2256 = vadd.f32 %v2117, %v2255
        %v2257 = vrot.slane %v2256, 2
        %v2258 = vadd.f32 %v2256, %v2257
        %v2259 = vrot.slane %v2258, 1
        %v2260 = vadd.f32 %v2258, %v2259
        %v2261 = vrot.slane %v2120, 4
        %v2262 = vadd.f32 %v2120, %v2261
        %v2263 = vrot.slane %v2262, 2
        %v2264 = vadd.f32 %v2262, %v2263
        %v2265 = vrot.slane %v2264, 1
        %v2266 = vadd.f32 %v2264, %v2265
        %v2267 = vrot.slane %v2125, 4
        %v2268 = vadd.f32 %v2125, %v2267
        %v2269 = vrot.slane %v2268, 2
        %v2270 = vadd.f32 %v2268, %v2269
        %v2271 = vrot.slane %v2270, 1
        %v2272 = vadd.f32 %v2270, %v2271
        %v2273 = vrot.slane %v2128, 4
        %v2274 = vadd.f32 %v2128, %v2273
        %v2275 = vrot.slane %v2274, 2
        %v2276 = vadd.f32 %v2274, %v2275
        %v2277 = vrot.slane %v2276, 1
        %v2278 = vadd.f32 %v2276, %v2277
        %v2279 = vrot.slane %v2133, 4
        %v2280 = vadd.f32 %v2133, %v2279
        %v2281 = vrot.slane %v2280, 2
        %v2282 = vadd.f32 %v2280, %v2281
        %v2283 = vrot.slane %v2282, 1
        %v2284 = vadd.f32 %v2282, %v2283
        %v2285 = vrot.slane %v2136, 4
        %v2286 = vadd.f32 %v2136, %v2285
        %v2287 = vrot.slane %v2286, 2
        %v2288 = vadd.f32 %v2286, %v2287
        %v2289 = vrot.slane %v2288, 1
        %v2290 = vadd.f32 %v2288, %v2289
        %v2291 = vrot.slane %v2141, 4
        %v2292 = vadd.f32 %v2141, %v2291
        %v2293 = vrot.slane %v2292, 2
        %v2294 = vadd.f32 %v2292, %v2293
        %v2295 = vrot.slane %v2294, 1
        %v2296 = vadd.f32 %v2294, %v2295
        %v2297 = vrot.slane %v2144, 4
        %v2298 = vadd.f32 %v2144, %v2297
        %v2299 = vrot.slane %v2298, 2
        %v2300 = vadd.f32 %v2298, %v2299
        %v2301 = vrot.slane %v2300, 1
        %v2302 = vadd.f32 %v2300, %v2301
        %v2303 = vrot.slane %v2149, 4
        %v2304 = vadd.f32 %v2149, %v2303
        %v2305 = vrot.slane %v2304, 2
        %v2306 = vadd.f32 %v2304, %v2305
        %v2307 = vrot.slane %v2306, 1
        %v2308 = vadd.f32 %v2306, %v2307
        %v2309 = vrot.slane %v2152, 4
        %v2310 = vadd.f32 %v2152, %v2309
        %v2311 = vrot.slane %v2310, 2
        %v2312 = vadd.f32 %v2310, %v2311
        %v2313 = vrot.slane %v2312, 1
        %v2314 = vadd.f32 %v2312, %v2313
        %v2315 = vrot.slane %v2157, 4
        %v2316 = vadd.f32 %v2157, %v2315
        %v2317 = vrot.slane %v2316, 2
        %v2318 = vadd.f32 %v2316, %v2317
        %v2319 = vrot.slane %v2318, 1
        %v2320 = vadd.f32 %v2318, %v2319
        %v2321 = vrot.slane %v2160, 4
        %v2322 = vadd.f32 %v2160, %v2321
        %v2323 = vrot.slane %v2322, 2
        %v2324 = vadd.f32 %v2322, %v2323
        %v2325 = vrot.slane %v2324, 1
        %v2326 = vadd.f32 %v2324, %v2325
        %v2327 = vrot.slane %v2165, 4
        %v2328 = vadd.f32 %v2165, %v2327
        %v2329 = vrot.slane %v2328, 2
        %v2330 = vadd.f32 %v2328, %v2329
        %v2331 = vrot.slane %v2330, 1
        %v2332 = vadd.f32 %v2330, %v2331
        %v2333 = vrot.slane %v2168, 4
        %v2334 = vadd.f32 %v2168, %v2333
        %v2335 = vrot.slane %v2334, 2
        %v2336 = vadd.f32 %v2334, %v2335
        %v2337 = vrot.slane %v2336, 1
        %v2338 = vadd.f32 %v2336, %v2337
        %v2339 = vrot.slane %v2173, 4
        %v2340 = vadd.f32 %v2173, %v2339
        %v2341 = vrot.slane %v2340, 2
        %v2342 = vadd.f32 %v2340, %v2341
        %v2343 = vrot.slane %v2342, 1
        %v2344 = vadd.f32 %v2342, %v2343
        %v2345 = vrot.slane %v2176, 4
        %v2346 = vadd.f32 %v2176, %v2345
        %v2347 = vrot.slane %v2346, 2
        %v2348 = vadd.f32 %v2346, %v2347
        %v2349 = vrot.slane %v2348, 1
        %v2350 = vadd.f32 %v2348, %v2349
        %v2351 = vrot.slane %v2181, 4
        %v2352 = vadd.f32 %v2181, %v2351
        %v2353 = vrot.slane %v2352, 2
        %v2354 = vadd.f32 %v2352, %v2353
        %v2355 = vrot.slane %v2354, 1
        %v2356 = vadd.f32 %v2354, %v2355
        %v2357 = vrot.slane %v2184, 4
        %v2358 = vadd.f32 %v2184, %v2357
        %v2359 = vrot.slane %v2358, 2
        %v2360 = vadd.f32 %v2358, %v2359
        %v2361 = vrot.slane %v2360, 1
        %v2362 = vadd.f32 %v2360, %v2361
        %v2363 = vrot.slane %v2189, 4
        %v2364 = vadd.f32 %v2189, %v2363
        %v2365 = vrot.slane %v2364, 2
        %v2366 = vadd.f32 %v2364, %v2365
        %v2367 = vrot.slane %v2366, 1
        %v2368 = vadd.f32 %v2366, %v2367
        %v2369 = vrot.slane %v2192, 4
        %v2370 = vadd.f32 %v2192, %v2369
        %v2371 = vrot.slane %v2370, 2
        %v2372 = vadd.f32 %v2370, %v2371
        %v2373 = vrot.slane %v2372, 1
        %v2374 = vadd.f32 %v2372, %v2373
        %v2375 = vrot.slane %v2197, 4
        %v2376 = vadd.f32 %v2197, %v2375
        %v2377 = vrot.slane %v2376, 2
        %v2378 = vadd.f32 %v2376, %v2377
        %v2379 = vrot.slane %v2378, 1
        %v2380 = vadd.f32 %v2378, %v2379
        %v2381 = vrot.slane %v2200, 4
        %v2382 = vadd.f32 %v2200, %v2381
        %v2383 = vrot.slane %v2382, 2
        %v2384 = vadd.f32 %v2382, %v2383
        %v2385 = vrot.slane %v2384, 1
        %v2386 = vadd.f32 %v2384, %v2385
        %v2387 = vrot.slane %v2205, 4
        %v2388 = vadd.f32 %v2205, %v2387
        %v2389 = vrot.slane %v2388, 2
        %v2390 = vadd.f32 %v2388, %v2389
        %v2391 = vrot.slane %v2390, 1
        %v2392 = vadd.f32 %v2390, %v2391
        %v2393 = vrot.slane %v2208, 4
        %v2394 = vadd.f32 %v2208, %v2393
        %v2395 = vrot.slane %v2394, 2
        %v2396 = vadd.f32 %v2394, %v2395
        %v2397 = vrot.slane %v2396, 1
        %v2398 = vadd.f32 %v2396, %v2397
        %v2399 = vrot.slane %v2213, 4
        %v2400 = vadd.f32 %v2213, %v2399
        %v2401 = vrot.slane %v2400, 2
        %v2402 = vadd.f32 %v2400, %v2401
        %v2403 = vrot.slane %v2402, 1
        %v2404 = vadd.f32 %v2402, %v2403
        %v2405 = vrot.slane %v2216, 4
        %v2406 = vadd.f32 %v2216, %v2405
        %v2407 = vrot.slane %v2406, 2
        %v2408 = vadd.f32 %v2406, %v2407
        %v2409 = vrot.slane %v2408, 1
        %v2410 = vadd.f32 %v2408, %v2409
        %v2411 = vrcp.pop 8.0
        %v2412 = vmul.f32 %v2224, %v2411
        %v2413 = vmul.f32 %v2230, %v2411
        %v2414 = vmul.f32 %v2236, %v2411
        %v2415 = vmul.f32 %v2242, %v2411
        %v2416 = vmul.f32 %v2248, %v2411
        %v2417 = vmul.f32 %v2254, %v2411
        %v2418 = vmul.f32 %v2260, %v2411
        %v2419 = vmul.f32 %v2266, %v2411
        %v2420 = vmul.f32 %v2272, %v2411
        %v2421 = vmul.f32 %v2278, %v2411
        %v2422 = vmul.f32 %v2284, %v2411
        %v2423 = vmul.f32 %v2290, %v2411
        %v2424 = vmul.f32 %v2296, %v2411
        %v2425 = vmul.f32 %v2302, %v2411
        %v2426 = vmul.f32 %v2308, %v2411
        %v2427 = vmul.f32 %v2314, %v2411
        %v2428 = vmul.f32 %v2320, %v2411
        %v2429 = vmul.f32 %v2326, %v2411
        %v2430 = vmul.f32 %v2332, %v2411
        %v2431 = vmul.f32 %v2338, %v2411
        %v2432 = vmul.f32 %v2344, %v2411
        %v2433 = vmul.f32 %v2350, %v2411
        %v2434 = vmul.f32 %v2356, %v2411
        %v2435 = vmul.f32 %v2362, %v2411
        %v2436 = vmul.f32 %v2368, %v2411
        %v2437 = vmul.f32 %v2374, %v2411
        %v2438 = vmul.f32 %v2380, %v2411
        %v2439 = vmul.f32 %v2386, %v2411
        %v2440 = vmul.f32 %v2392, %v2411
        %v2441 = vmul.f32 %v2398, %v2411
        %v2442 = vmul.f32 %v2404, %v2411
        %v2443 = vmul.f32 %v2410, %v2411
        %v2444 = vpack.c.bf16 %v2412, %v2412
        %v2445 = vpack.c.bf16 %v2413, %v2413
        %v2446 = vpack.c.bf16 %v2414, %v2414
        %v2447 = vpack.c.bf16 %v2415, %v2415
        %v2448 = vpack.c.bf16 %v2416, %v2416
        %v2449 = vpack.c.bf16 %v2417, %v2417
        %v2450 = vpack.c.bf16 %v2418, %v2418
        %v2451 = vpack.c.bf16 %v2419, %v2419
        %v2452 = vpack.c.bf16 %v2420, %v2420
        %v2453 = vpack.c.bf16 %v2421, %v2421
        %v2454 = vpack.c.bf16 %v2422, %v2422
        %v2455 = vpack.c.bf16 %v2423, %v2423
        %v2456 = vpack.c.bf16 %v2424, %v2424
        %v2457 = vpack.c.bf16 %v2425, %v2425
        %v2458 = vpack.c.bf16 %v2426, %v2426
        %v2459 = vpack.c.bf16 %v2427, %v2427
        %v2460 = vpack.c.bf16 %v2428, %v2428
        %v2461 = vpack.c.bf16 %v2429, %v2429
        %v2462 = vpack.c.bf16 %v2430, %v2430
        %v2463 = vpack.c.bf16 %v2431, %v2431
        %v2464 = vpack.c.bf16 %v2432, %v2432
        %v2465 = vpack.c.bf16 %v2433, %v2433
        %v2466 = vpack.c.bf16 %v2434, %v2434
        %v2467 = vpack.c.bf16 %v2435, %v2435
        %v2468 = vpack.c.bf16 %v2436, %v2436
        %v2469 = vpack.c.bf16 %v2437, %v2437
        %v2470 = vpack.c.bf16 %v2438, %v2438
        %v2471 = vpack.c.bf16 %v2439, %v2439
        %v2472 = vpack.c.bf16 %v2440, %v2440
        %v2473 = vpack.c.bf16 %v2441, %v2441
        %v2474 = vpack.c.bf16 %v2442, %v2442
        %v2475 = vpack.c.bf16 %v2443, %v2443
        %v2476 = vld [vmem:[#allocation3] sm:$0xff]
        %v2477 = vld [vmem:[#allocation3 + $0x8] sm:$0xff]
        %v2478 = vld [vmem:[#allocation3 + $0x10] sm:$0xff]
        %v2479 = vld [vmem:[#allocation3 + $0x18] sm:$0xff]
        %v2480 = vld [vmem:[#allocation3 + $0x20] sm:$0xff]
        %v2481 = vld [vmem:[#allocation3 + $0x28] sm:$0xff]
        %v2482 = vld [vmem:[#allocation3 + $0x30] sm:$0xff]
        %v2483 = vld [vmem:[#allocation3 + $0x38] sm:$0xff]
        %v2484 = vld [vmem:[#allocation3 + $0x40] sm:$0xff]
        %v2485 = vld [vmem:[#allocation3 + $0x48] sm:$0xff]
        %v2486 = vld [vmem:[#allocation3 + $0x50] sm:$0xff]
        %v2487 = vld [vmem:[#allocation3 + $0x58] sm:$0xff]
        %v2488 = vld [vmem:[#allocation3 + $0x60] sm:$0xff]
        %v2489 = vld [vmem:[#allocation3 + $0x68] sm:$0xff]
        %v2490 = vld [vmem:[#allocation3 + $0x70] sm:$0xff]
        %v2491 = vld [vmem:[#allocation3 + $0x78] sm:$0xff]
        %v2492 = vld [vmem:[%s5] sm:$0x3]
        %v2494 = vlaneseq
        %v2495 = vshrl.u32 %v2494, 7
        %v2496 = vsub.s32 0, %v2495
        %v2497 = vrot.slane %v2492, %v2496
        %v2498 = vlaneseq
        %v2499 = vshrl.u32 %v2498, 7
        %v2500 = vsub.s32 1, %v2499
        %v2501 = vrot.slane %v2492, %v2500
        %v2536 = vunpack.c.l.b16 %v2444
        %v2537 = vunpack.c.l.b16 %v2445
        %v2538 = vunpack.c.l.b16 %v2446
        %v2539 = vunpack.c.l.b16 %v2447
        %v2540 = vunpack.c.l.b16 %v2448
        %v2541 = vunpack.c.l.b16 %v2449
        %v2542 = vunpack.c.l.b16 %v2450
        %v2543 = vunpack.c.l.b16 %v2451
        %v2544 = vunpack.c.l.b16 %v2452
        %v2545 = vunpack.c.l.b16 %v2453
        %v2546 = vunpack.c.l.b16 %v2454
        %v2547 = vunpack.c.l.b16 %v2455
        %v2548 = vunpack.c.l.b16 %v2456
        %v2549 = vunpack.c.l.b16 %v2457
        %v2550 = vunpack.c.l.b16 %v2458
        %v2551 = vunpack.c.l.b16 %v2459
        %v2552 = vunpack.c.l.b16 %v2460
        %v2553 = vunpack.c.l.b16 %v2461
        %v2554 = vunpack.c.l.b16 %v2462
        %v2555 = vunpack.c.l.b16 %v2463
        %v2556 = vunpack.c.l.b16 %v2464
        %v2557 = vunpack.c.l.b16 %v2465
        %v2558 = vunpack.c.l.b16 %v2466
        %v2559 = vunpack.c.l.b16 %v2467
        %v2560 = vunpack.c.l.b16 %v2468
        %v2561 = vunpack.c.l.b16 %v2469
        %v2562 = vunpack.c.l.b16 %v2470
        %v2563 = vunpack.c.l.b16 %v2471
        %v2564 = vunpack.c.l.b16 %v2472
        %v2565 = vunpack.c.l.b16 %v2473
        %v2566 = vunpack.c.l.b16 %v2474
        %v2567 = vunpack.c.l.b16 %v2475
        %vm2568 = vcmask 1041409
        %v2569 = vsel %vm2568, %v2537, %v2536
        %vm2570 = vcmask 1042434
        %v2571 = vsel %vm2570, %v2538, %v2569
        %vm2572 = vcmask 1043459
        %v2573 = vsel %vm2572, %v2539, %v2571
        %vm2574 = vcmask 1044484
        %v2575 = vsel %vm2574, %v2540, %v2573
        %vm2576 = vcmask 1045509
        %v2577 = vsel %vm2576, %v2541, %v2575
        %vm2578 = vcmask 1046534
        %v2579 = vsel %vm2578, %v2542, %v2577
        %vm2580 = vcmask 1047559
        %v2581 = vsel %vm2580, %v2543, %v2579
        %v2582 = vsel %vm2568, %v2545, %v2544
        %v2583 = vsel %vm2570, %v2546, %v2582
        %v2584 = vsel %vm2572, %v2547, %v2583
        %v2585 = vsel %vm2574, %v2548, %v2584
        %v2586 = vsel %vm2576, %v2549, %v2585
        %v2587 = vsel %vm2578, %v2550, %v2586
        %v2588 = vsel %vm2580, %v2551, %v2587
        %v2589 = vsel %vm2568, %v2553, %v2552
        %v2590 = vsel %vm2570, %v2554, %v2589
        %v2591 = vsel %vm2572, %v2555, %v2590
        %v2592 = vsel %vm2574, %v2556, %v2591
        %v2593 = vsel %vm2576, %v2557, %v2592
        %v2594 = vsel %vm2578, %v2558, %v2593
        %v2595 = vsel %vm2580, %v2559, %v2594
        %v2596 = vsel %vm2568, %v2561, %v2560
        %v2597 = vsel %vm2570, %v2562, %v2596
        %v2598 = vsel %vm2572, %v2563, %v2597
        %v2599 = vsel %vm2574, %v2564, %v2598
        %v2600 = vsel %vm2576, %v2565, %v2599
        %v2601 = vsel %vm2578, %v2566, %v2600
        %v2602 = vsel %vm2580, %v2567, %v2601
        %v2603 = vpack.c.b16 %v2588, %v2581
        %v2604 = vpack.c.b16 %v2602, %v2595
        %2607 = vmatprep.subr.bf16.mxu0 %v2477
        %2608 = vmatpush1.bf16.msra.mxu0 %v2476
        %2609 = vmatprep.subr.bf16.mxu0 %v2479
        %2610 = vmatpush1.bf16.msra.mxu0 %v2478
        %2611 = vmatprep.subr.bf16.mxu0 %v2481
        %2612 = vmatpush1.bf16.msra.mxu0 %v2480
        %2613 = vmatprep.subr.bf16.mxu0 %v2483
        %2614 = vmatpush1.bf16.msra.mxu0 %v2482
        %2615 = vmatprep.subr.bf16.mxu0 %v2485
        %2616 = vmatpush1.bf16.msra.mxu0 %v2484
        %2617 = vmatprep.subr.bf16.mxu0 %v2487
        %2618 = vmatpush1.bf16.msra.mxu0 %v2486
        %2619 = vmatprep.subr.bf16.mxu0 %v2489
        %2620 = vmatpush1.bf16.msra.mxu0 %v2488
        %2621 = vmatprep.subr.bf16.mxu0 %v2491
        %2622 = vmatpush1.bf16.msra.mxu0 %v2490
        %2623 = vmatprep.subr.bf16.mxu0 0
        %2624 = vmatpush1.bf16.msra.mxu0 0
        %2625 = vmatprep.subr.bf16.mxu0 0
        %2626 = vmatpush1.bf16.msra.mxu0 0
        %2627 = vmatprep.subr.bf16.mxu0 0
        %2628 = vmatpush1.bf16.msra.mxu0 0
        %2629 = vmatprep.subr.bf16.mxu0 0
        %2630 = vmatpush1.bf16.msra.mxu0 0
        %2631 = vmatprep.subr.bf16.mxu0 0
        %2632 = vmatpush1.bf16.msra.mxu0 0
        %2633 = vmatprep.subr.bf16.mxu0 0
        %2634 = vmatpush1.bf16.msra.mxu0 0
        %2635 = vmatprep.subr.bf16.mxu0 0
        %2636 = vmatpush1.bf16.msra.mxu0 0
        %2637 = vmatprep.subr.bf16.mxu0 0
        %2638 = vmatpush1.bf16.msra.mxu0 0
        %2639 = vmatprep.mubr.bf16.mxu0 0
        %2640 = vmatmul.mubr.bf16.gmra.mrb[0].mxu0 %v2603
        %v2641 = vpop.f32.mrb[0].mxu0
        %v2642 = vadd.f32 %v2497, %v2641
        %v2643 = vpop.f32.mrb[0].mxu0
        %v2644 = vadd.f32 %v2501, %v2643
        %v2645 = vpop.f32.mrb[0].mxu0
        %v2646 = vadd.f32 %v2497, %v2645
        %v2647 = vpop.f32.mrb[0].mxu0
        %v2648 = vadd.f32 %v2501, %v2647
        %2649 = vmatprep.mubr.bf16.mxu0 0
        %2650 = vmatmul.mubr.bf16.gmra.mrb[0].mxu0 %v2604
        %v2651 = vpop.f32.mrb[0].mxu0
        %v2652 = vadd.f32 %v2497, %v2651
        %v2653 = vpop.f32.mrb[0].mxu0
        %v2654 = vadd.f32 %v2501, %v2653
        %v2655 = vpop.f32.mrb[0].mxu0
        %v2656 = vadd.f32 %v2497, %v2655
        %v2657 = vpop.f32.mrb[0].mxu0
        %v2658 = vadd.f32 %v2501, %v2657
        %2659 = vdwg.mxu0
        %v2660 = vmax.f32 %v2642, 0.0
        %v2661 = vmax.f32 %v2644, 0.0
        %v2662 = vmax.f32 %v2646, 0.0
        %v2663 = vmax.f32 %v2648, 0.0
        %v2664 = vmax.f32 %v2652, 0.0
        %v2665 = vmax.f32 %v2654, 0.0
        %v2666 = vmax.f32 %v2656, 0.0
        %v2667 = vmax.f32 %v2658, 0.0
        %v2668 = vpack.c.bf16 %v2662, %v2660
        %v2669 = vpack.c.bf16 %v2663, %v2661
        %v2670 = vpack.c.bf16 %v2666, %v2664
        %v2671 = vpack.c.bf16 %v2667, %v2665
        %v2672 = vld [vmem:[#allocation4] sm:$0xff]
        %v2673 = vld [vmem:[#allocation4 + $0x8] sm:$0xff]
        %v2674 = vld [vmem:[#allocation4 + $0x10] sm:$0xff]
        %v2675 = vld [vmem:[#allocation4 + $0x18] sm:$0xff]
        %v2676 = vld [vmem:[#allocation4 + $0x20] sm:$0xff]
        %v2677 = vld [vmem:[#allocation4 + $0x28] sm:$0xff]
        %v2678 = vld [vmem:[#allocation4 + $0x30] sm:$0xff]
        %v2679 = vld [vmem:[#allocation4 + $0x38] sm:$0xff]
        %v2680 = vld [vmem:[#allocation4 + $0x40] sm:$0xff]
        %v2681 = vld [vmem:[#allocation4 + $0x48] sm:$0xff]
        %v2682 = vld [vmem:[#allocation4 + $0x50] sm:$0xff]
        %v2683 = vld [vmem:[#allocation4 + $0x58] sm:$0xff]
        %v2684 = vld [vmem:[#allocation4 + $0x60] sm:$0xff]
        %v2685 = vld [vmem:[#allocation4 + $0x68] sm:$0xff]
        %v2686 = vld [vmem:[#allocation4 + $0x70] sm:$0xff]
        %v2687 = vld [vmem:[#allocation4 + $0x78] sm:$0xff]
        %v2688 = vld [vmem:[%s7] sm:$0x1]
        %v2690 = vlaneseq
        %v2691 = vshrl.u32 %v2690, 7
        %v2692 = vsub.s32 0, %v2691
        %v2693 = vrot.slane %v2688, %v2692
        %2695 = vmatprep.subr.bf16.mxu0 0
        %2696 = vmatpush1.bf16.msra.mxu0 %v2672
        %2697 = vmatprep.subr.bf16.mxu0 0
        %2698 = vmatpush1.bf16.msra.mxu0 %v2673
        %2699 = vmatprep.subr.bf16.mxu0 0
        %2700 = vmatpush1.bf16.msra.mxu0 %v2674
        %2701 = vmatprep.subr.bf16.mxu0 0
        %2702 = vmatpush1.bf16.msra.mxu0 %v2675
        %2703 = vmatprep.subr.bf16.mxu0 0
        %2704 = vmatpush1.bf16.msra.mxu0 %v2676
        %2705 = vmatprep.subr.bf16.mxu0 0
        %2706 = vmatpush1.bf16.msra.mxu0 %v2677
        %2707 = vmatprep.subr.bf16.mxu0 0
        %2708 = vmatpush1.bf16.msra.mxu0 %v2678
        %2709 = vmatprep.subr.bf16.mxu0 0
        %2710 = vmatpush1.bf16.msra.mxu0 %v2679
        %2711 = vmatprep.subr.bf16.mxu0 0
        %2712 = vmatpush1.bf16.msra.mxu0 %v2680
        %2713 = vmatprep.subr.bf16.mxu0 0
        %2714 = vmatpush1.bf16.msra.mxu0 %v2681
        %2715 = vmatprep.subr.bf16.mxu0 0
        %2716 = vmatpush1.bf16.msra.mxu0 %v2682
        %2717 = vmatprep.subr.bf16.mxu0 0
        %2718 = vmatpush1.bf16.msra.mxu0 %v2683
        %2719 = vmatprep.subr.bf16.mxu0 0
        %2720 = vmatpush1.bf16.msra.mxu0 %v2684
        %2721 = vmatprep.subr.bf16.mxu0 0
        %2722 = vmatpush1.bf16.msra.mxu0 %v2685
        %2723 = vmatprep.subr.bf16.mxu0 0
        %2724 = vmatpush1.bf16.msra.mxu0 %v2686
        %2725 = vmatprep.subr.bf16.mxu0 0
        %2726 = vmatpush1.bf16.msra.mxu0 %v2687
        %2727 = vmatprep.mubr.bf16.mxu0 %v2669
        %2728 = vmatmul.mubr.bf16.gmra.mrb[0].mxu0 %v2668
        %v2729 = vpop.f32.mrb[0].mxu0
        %v2730 = vadd.f32 %v2693, %v2729
        %v2731 = vpop.f32.mrb[0].mxu0
        %v2732 = vpop.f32.mrb[0].mxu0
        %v2733 = vadd.f32 %v2693, %v2732
        %v2734 = vpop.f32.mrb[0].mxu0
        %2735 = vmatprep.mubr.bf16.mxu0 %v2671
        %2736 = vmatmul.mubr.bf16.gmra.mrb[0].mxu0 %v2670
        %v2737 = vpop.f32.mrb[0].mxu0
        %v2738 = vadd.f32 %v2693, %v2737
        %v2739 = vpop.f32.mrb[0].mxu0
        %v2740 = vpop.f32.mrb[0].mxu0
        %v2741 = vadd.f32 %v2693, %v2740
        %v2742 = vpop.f32.mrb[0].mxu0
        %2743 = vdwg.mxu0
        %vm2744 = vcmask 130048
        %2745 = vst.msk [vmem:[%s288] sm:$0xff] %vm2744, %v2730
        %2746 = vst.msk [vmem:[%s288 + $0x8] sm:$0xff] %vm2744, %v2733
        %2747 = vst.msk [vmem:[%s288 + $0x10] sm:$0xff] %vm2744, %v2738
        %2748 = vst.msk [vmem:[%s288 + $0x18] sm:$0xff] %vm2744, %v2741
        %s2749 = smul.u32 4, %s25
        %p2750 = scmp.lt.s32.totalorder %s2749, 7
        %s2751 = scalar_select %p2750, %s2749, 7
        %s2752 = smul.addr %s2751, 8
        %s2753 = scalar_lea.vmem %s8, %s2752
        // Predicated region
        $region127: #{tpu_custom_call.1} parent=39 // pred_check
          %p2754 = pneg %p158
        $region128: #{tpu_custom_call.1} parent=39 // pred_check_branch
          %2756 = sbr.rel (%p2754) target = $region130
        $region129: #{tpu_custom_call.1} parent=39 // pred_region
          %s2757 = smul.u32 4, %s25
        $region130: #{tpu_custom_call.1} parent=39 // pred_fallthru
          _
      $region40: #{tpu_custom_call.1} parent=5 // pred_fallthru
        _
      %p2758 = scmp.le.s32.totalorder 2, %s20
      // Predicated region
      $region131: #{tpu_custom_call.1} parent=5 // pred_check
        %p2759 = pneg %p2758
      $region132: #{tpu_custom_call.1} parent=5 // pred_check_branch
        %2761 = sbr.rel (%p2759) target = $region134
      $region133: #{tpu_custom_call.1} parent=5 // pred_region
        %s2762 = ssub.s32 %s20, 2
        // Predicated region
        $region135: #{tpu_custom_call.1} parent=133 // pred_check
          %p2763 = pneg %p164
        $region136: #{tpu_custom_call.1} parent=133 // pred_check_branch
          %2765 = sbr.rel (%p2763) target = $region138
        $region137: #{tpu_custom_call.1} parent=133 // pred_region
          %s2766 = smul.u32 4, %s26
          %p2767 = scmp.lt.s32.totalorder %s2766, 7
          %s2768 = scalar_select %p2767, %s2766, 7
          %s2769 = smul.addr %s2768, 8
          %s2770 = scalar_lea.vmem %s8, %s2769
        $region138: #{tpu_custom_call.1} parent=133 // pred_fallthru
          _
      $region134: #{tpu_custom_call.1} parent=5 // pred_fallthru
        _
    $region6: #{tpu_custom_call.1} parent=1 // loop_footer
      %s24 = sadd.s32 1, %s20
    $region7: #{tpu_custom_call.1} parent=1 // loop_footer_branch
      %19 = sbr.rel target = $region3
    $region8: #{tpu_custom_call.1} parent=1 // loop_exit
      _
    %2771 = vsyncpa [#allocation6], 1
    %s2772 = scalar_lea.sflag [#allocation6], 1
    %2773 = vsyncpa %s2772, 1
    %2774 = vsyncpa [#allocation8], 1
    %s2775 = scalar_lea.sflag [#allocation8], 1
    %2776 = vsyncpa %s2775, 1

</llo_original>
